<compile_context>
chip_gen: v7x
topology: tpu7x:2x2x1
jax: 0.10.0
libtpu: 0.0.40
codegen_flags: <defaults>
</compile_context>

<pallas_src>
import functools
import math

import jax
import jax.numpy as jnp
from jax import lax
from jax.experimental import pallas as pl
from jax.experimental.pallas import tpu as pltpu

LN_EPS = 1e-5          # nn.LayerNorm default eps
ATTN_EPS = 1e-6        # FastAttention eps (denominator clamp)
L2_EPS = 1e-12         # F.normalize default eps
LOG_SCALE = math.log(0.1)   # fold the "* 0.1" feature-map scale into the exp()


def _fast_attention_kernel(q_ref, k_ref, v_ref, proj_ref, ssum_ref, smd_ref,
                           gamma_ref, beta_ref, o_ref, qkv_sc, *,
                           groups, seq_len, head_dim):
    G, T, D = groups, seq_len, head_dim
    W = q_ref.shape[-1]                  # pack * D (lane-packed heads)
    R = G * T

    ssum = ssum_ref[...]                 # (W, W)   per-head lane-segment summer
    smd = smd_ref[...]                   # (PM, W)  feature-segment -> head-lane map / kv mask
    proj = proj_ref[...]                 # (W, PM)  block-diagonal projection
    gamma = gamma_ref[...]               # (1, W)
    beta = beta_ref[...]                 # (1, W)
    inv_d = 1.0 / D

    def seg_ln(x):                       # LayerNorm over each head's D-lane segment
        mu = jnp.dot(x, ssum, preferred_element_type=jnp.float32) * inv_d
        c = x - mu
        var = jnp.dot(c * c, ssum, preferred_element_type=jnp.float32) * inv_d
        return c * lax.rsqrt(var + LN_EPS) * gamma + beta

    def seg_l2(x):                       # F.normalize(dim=-1) per head segment
        n2 = jnp.dot(x * x, ssum, preferred_element_type=jnp.float32)
        return x / jnp.maximum(jnp.sqrt(n2), L2_EPS)

    # (G, T, W) -> (G*T, W); a free view when T is a multiple of 8.
    q2 = q_ref[...].reshape(R, W)
    k2 = k_ref[...].reshape(R, W)
    v2 = v_ref[...].reshape(R, W)

    qn = seg_l2(seg_ln(q2))
    kn = seg_l2(seg_ln(k2))
    vn = seg_ln(v2)

    # One lane-dense (R, W) @ (W, PM) projection per operand; "* 0.1" folded
    # into the exponent.
    qp = jnp.exp(jnp.clip(jnp.dot(qn, proj, preferred_element_type=jnp.float32),
                          -15.0, 15.0) + LOG_SCALE)                     # (R, PM)
    kp = jnp.exp(jnp.clip(jnp.dot(kn, proj, preferred_element_type=jnp.float32),
                          -15.0, 15.0) + LOG_SCALE)                     # (R, PM)

    # TODO(synk): the optional `mask` argument of the PyTorch forward is not
    #             implemented (only the mask=None path is reproduced here).

    # Per-(row, head) denominator, broadcast across each head's D lanes by the
    # MXU; kv*0.1 / qkv*0.1 fold into the (EUP, approx) reciprocal.
    den = jnp.dot(qp * kp, smd, preferred_element_type=jnp.float32)     # (R, W)
    inv = pl.reciprocal(jnp.maximum(den, ATTN_EPS), approx=True) * 0.01

    # Per-group linear-attention contraction (bounded static unroll).  kv is
    # formed for all packed heads at once and masked to its per-head block
    # diagonal; only qkv is written here - the epilogue is hoisted below.
    for g in range(G):
        r0 = g * T
        kv = lax.dot_general(kp[r0:r0 + T, :], vn[r0:r0 + T, :],
                             (((0,), (0,)), ((), ())),
                             preferred_element_type=jnp.float32) * smd  # (PM, W)
        qkv_sc[r0:r0 + T, :] = jnp.dot(qp[r0:r0 + T, :], kv,
                                       preferred_element_type=jnp.float32)

    # Single batched epilogue: scale, LayerNorm, one lane-dense store.
    o_ref[...] = seg_ln(qkv_sc[...] * inv).reshape(G, T, W).astype(o_ref.dtype)


def _choose_groups_per_step(num_groups, t, w, pm, vmem_cap_bytes):
    """How many packed head-groups each grid step processes.

    Sized so the double-buffered q/k/v/out blocks plus live intermediates fit
    comfortably in VMEM, while keeping >= 4 grid steps when possible (>= 2
    pipelined steps per TensorCore on dual-core parts) and bounding the static
    per-group unroll of the contraction loop (register pressure).
    """
    bytes_per_group = 4 * (8 * t * w + 6 * t * max(w, pm))   # fp32
    budget = max(vmem_cap_bytes // 3, 4 * 1024 * 1024)
    gb = max(1, min(num_groups, budget // max(bytes_per_group, 1)))
    gb = min(gb, 8)                                          # bound the unroll
    target_steps = 4 if num_groups >= 4 else num_groups
    if target_steps:
        gb = min(gb, max(1, num_groups // target_steps))
    while num_groups % gb:                                   # uniform blocks
        gb -= 1
    return gb


def fast_attention(q, k, v, proj, gamma, beta):
    """Pallas forward of FastAttention (mask=None path). q/k/v: (B, H, T, D)."""
    B, H, T, D = q.shape
    M = proj.shape[1]
    BH = B * H

    # Lane packing: put `pack` heads side by side on the 128-lane axis so the
    # VPU/EUP-bound elementwise work runs lane-dense instead of at D/128.
    if D <= 128 and 128 % D == 0:
        pack = math.gcd(128 // D, BH)
    else:
        pack = 1
    groups = BH // pack
    W, PM = pack * D, pack * M

    def pack_heads(x):   # (B, H, T, D) -> (groups, T, pack*D)  [layout plumbing]
        return (x.reshape(groups, pack, T, D)
                 .transpose(0, 2, 1, 3)
                 .reshape(groups, T, W))

    q_p, k_p, v_p = pack_heads(q), pack_heads(k), pack_heads(v)

    eye = jnp.eye(pack, dtype=jnp.float32)
    proj_bd = jnp.kron(eye, proj.astype(jnp.float32))              # (W, PM)
    seg_sum = jnp.kron(eye, jnp.ones((D, D), jnp.float32))         # (W, W)
    feat_map = jnp.kron(eye, jnp.ones((M, D), jnp.float32))        # (PM, W)
    gamma_p = jnp.tile(gamma.reshape(1, D).astype(jnp.float32), (1, pack))
    beta_p = jnp.tile(beta.reshape(1, D).astype(jnp.float32), (1, pack))

    # VMEM-budgeted grid (per-generation capacity), scoped VMEM limit raised.
    try:
        vmem_cap = int(pltpu.get_tpu_info().vmem_capacity_bytes)
    except Exception:
        vmem_cap = 64 * 1024 * 1024
    gb = _choose_groups_per_step(groups, T, W, PM, vmem_cap)
    steps = groups // gb
    vmem_limit = int(min(vmem_cap * 3 // 4, 100 * 1024 * 1024))

    kernel = functools.partial(_fast_attention_kernel,
                               groups=gb, seq_len=T, head_dim=D)

    out = pl.pallas_call(
        kernel,
        out_shape=jax.ShapeDtypeStruct((groups, T, W), q.dtype),
        grid_spec=pltpu.PrefetchScalarGridSpec(
            num_scalar_prefetch=0,
            grid=(steps,),
            in_specs=[
                pl.BlockSpec((gb, T, W), lambda i: (i, 0, 0)),
                pl.BlockSpec((gb, T, W), lambda i: (i, 0, 0)),
                pl.BlockSpec((gb, T, W), lambda i: (i, 0, 0)),
                pl.BlockSpec((W, PM), lambda i: (0, 0)),
                pl.BlockSpec((W, W), lambda i: (0, 0)),
                pl.BlockSpec((PM, W), lambda i: (0, 0)),
                pl.BlockSpec((1, W), lambda i: (0, 0)),
                pl.BlockSpec((1, W), lambda i: (0, 0)),
            ],
            out_specs=pl.BlockSpec((gb, T, W), lambda i: (i, 0, 0)),
            scratch_shapes=[pltpu.VMEM((gb * T, W), jnp.float32)],
        ),
        compiler_params=pltpu.CompilerParams(
            dimension_semantics=("parallel",),
            vmem_limit_bytes=vmem_limit),
    )(q_p, k_p, v_p, proj_bd, seg_sum, feat_map, gamma_p, beta_p)

    return (out.reshape(groups, T, pack, D)
               .transpose(0, 2, 1, 3)
               .reshape(B, H, T, D))


def create_projection(key, head_dim, num_features, ortho=True):
    """Deterministic replica of FastAttention._create_projection."""
    pm = jax.random.normal(key, (head_dim, num_features), dtype=jnp.float32)
    if ortho:
        qmat, _ = jnp.linalg.qr(pm, mode="reduced")
        pm = qmat
    # F.normalize(dim=0) with eps=1e-12, then scale by head_dim ** -0.25
    pm = pm / jnp.maximum(jnp.linalg.norm(pm, axis=0, keepdims=True), L2_EPS)
    return pm * (head_dim ** -0.25)


def reference(q, k, v, proj, gamma, beta):
    """Pure-JAX reference (mirror of the PyTorch forward, mask=None)."""
    hp = jax.lax.Precision.HIGHEST

    def ln(x):
        mu = jnp.mean(x, -1, keepdims=True)
        var = jnp.mean((x - mu) ** 2, -1, keepdims=True)
        return (x - mu) / jnp.sqrt(var + LN_EPS) * gamma + beta

    def l2(x):
        n = jnp.sqrt(jnp.sum(x * x, -1, keepdims=True))
        return x / jnp.maximum(n, L2_EPS)

    qn = l2(ln(q))
    kn = l2(ln(k))
    vn = ln(v)
    qp = jnp.exp(jnp.clip(jnp.einsum("bhtn,nm->bhtm", qn, proj, precision=hp),
                          -15.0, 15.0)) * 0.1
    kp = jnp.exp(jnp.clip(jnp.einsum("bhtn,nm->bhtm", kn, proj, precision=hp),
                          -15.0, 15.0)) * 0.1
    kv = jnp.einsum("bhtm,bhtn->bhmn", kp, vn, precision=hp) * 0.1
    qkv = jnp.einsum("bhtm,bhmn->bhtn", qp, kv, precision=hp) * 0.1
    den = jnp.maximum(jnp.einsum("bhtm,bhtm->bht", qp, kp, precision=hp)[..., None],
                      ATTN_EPS)
    return ln(qkv / den)


if __name__ == "__main__":
    B, H, T, D = 2, 4, 8, 32
    NUM_FEATURES = 64   # FastAttention(dim=D, num_features=64, ortho=False)

    key = jax.random.PRNGKey(0)
    kq, kk, kv_, kp_, kg, kb = jax.random.split(key, 6)
    q = jax.random.normal(kq, (B, H, T, D), jnp.float32)
    k = jax.random.normal(kk, (B, H, T, D), jnp.float32)
    v = jax.random.normal(kv_, (B, H, T, D), jnp.float32)

    # ortho=False keeps num_features != head_dim (QR in the ortho path would
    # collapse the projection to head_dim columns, as in the PyTorch module).
    proj = create_projection(kp_, D, NUM_FEATURES, ortho=False)
    # Deterministic, non-trivial LayerNorm parameters.
    gamma = 1.0 + 0.1 * jax.random.normal(kg, (D,), jnp.float32)
    beta = 0.1 * jax.random.normal(kb, (D,), jnp.float32)

    out = fast_attention(q, k, v, proj, gamma, beta)
    jax.block_until_ready(out)

    ref = reference(q, k, v, proj, gamma, beta)
    assert out.shape == (B, H, T, D)
    err = float(jnp.max(jnp.abs(out - ref)))
    # Tolerance: default-precision f32 MXU matmuls (the kernel's segment
    # reductions / contractions and any reference einsum passes) bound the
    # agreement at the ~1e-3 level in the worst case; typical agreement is far
    # tighter, and structural packing/masking/layout bugs would show up as
    # O(0.1 .. 1) errors.
    assert err < 1e-2, f"Pallas output mismatch vs reference (max abs err {err:.3e})"
    print("KERNEL_OK")
</pallas_src>

<mosaic_0001>
module attributes {stable_mosaic.version = 11 : i64} {
  func.func @_fast_attention_kernel(%arg0: i32, %arg1: memref<1x8x128xf32, #tpu.memory_space<vmem>>, %arg2: memref<1x8x128xf32, #tpu.memory_space<vmem>>, %arg3: memref<1x8x128xf32, #tpu.memory_space<vmem>>, %arg4: memref<128x256xf32, #tpu.memory_space<vmem>>, %arg5: memref<128x128xf32, #tpu.memory_space<vmem>>, %arg6: memref<256x128xf32, #tpu.memory_space<vmem>>, %arg7: memref<1x128xf32, #tpu.memory_space<vmem>>, %arg8: memref<1x128xf32, #tpu.memory_space<vmem>>, %arg9: memref<1x8x128xf32, #tpu.memory_space<vmem>>, %arg10: memref<8x128xf32, #tpu.memory_space<vmem>>) attributes {dimension_semantics = [#tpu.dimension_semantics<parallel>], iteration_bounds = array<i64: 2>, scalar_prefetch = 0 : i64, scratch_operands = 1 : i64, tpu.core_type = #tpu.core_type<tc>, window_params = [{transform_indices = @transform_0, window_bounds = array<i64: 1, 8, 128>}, {transform_indices = @transform_1, window_bounds = array<i64: 1, 8, 128>}, {transform_indices = @transform_2, window_bounds = array<i64: 1, 8, 128>}, {pipeline_mode = #tpu.pipeline_mode<synchronous>, transform_indices = @transform_3, window_bounds = array<i64: 128, 256>}, {pipeline_mode = #tpu.pipeline_mode<synchronous>, transform_indices = @transform_4, window_bounds = array<i64: 128, 128>}, {pipeline_mode = #tpu.pipeline_mode<synchronous>, transform_indices = @transform_5, window_bounds = array<i64: 256, 128>}, {pipeline_mode = #tpu.pipeline_mode<synchronous>, transform_indices = @transform_6, window_bounds = array<i64: 1, 128>}, {pipeline_mode = #tpu.pipeline_mode<synchronous>, transform_indices = @transform_7, window_bounds = array<i64: 1, 128>}, {transform_indices = @transform_8, window_bounds = array<i64: 1, 8, 128>}]} {
    %c0 = arith.constant 0 : index
    %c0_0 = arith.constant 0 : index
    %0 = vector.load %arg5[%c0, %c0_0] : memref<128x128xf32, #tpu.memory_space<vmem>>, vector<128x128xf32>
    %c0_1 = arith.constant 0 : index
    %c0_2 = arith.constant 0 : index
    %1 = vector.load %arg6[%c0_1, %c0_2] : memref<256x128xf32, #tpu.memory_space<vmem>>, vector<256x128xf32>
    %c0_3 = arith.constant 0 : index
    %c0_4 = arith.constant 0 : index
    %2 = vector.load %arg4[%c0_3, %c0_4] : memref<128x256xf32, #tpu.memory_space<vmem>>, vector<128x256xf32>
    %c0_5 = arith.constant 0 : index
    %c0_6 = arith.constant 0 : index
    %3 = vector.load %arg7[%c0_5, %c0_6] : memref<1x128xf32, #tpu.memory_space<vmem>>, vector<1x128xf32>
    %c0_7 = arith.constant 0 : index
    %c0_8 = arith.constant 0 : index
    %4 = vector.load %arg8[%c0_7, %c0_8] : memref<1x128xf32, #tpu.memory_space<vmem>>, vector<1x128xf32>
    %c0_9 = arith.constant 0 : index
    %c0_10 = arith.constant 0 : index
    %c0_11 = arith.constant 0 : index
    %5 = vector.load %arg1[%c0_9, %c0_10, %c0_11] : memref<1x8x128xf32, #tpu.memory_space<vmem>>, vector<1x8x128xf32>
    %6 = vector.shape_cast %5 : vector<1x8x128xf32> to vector<8x128xf32>
    %c0_12 = arith.constant 0 : index
    %c0_13 = arith.constant 0 : index
    %c0_14 = arith.constant 0 : index
    %7 = vector.load %arg2[%c0_12, %c0_13, %c0_14] : memref<1x8x128xf32, #tpu.memory_space<vmem>>, vector<1x8x128xf32>
    %8 = vector.shape_cast %7 : vector<1x8x128xf32> to vector<8x128xf32>
    %c0_15 = arith.constant 0 : index
    %c0_16 = arith.constant 0 : index
    %c0_17 = arith.constant 0 : index
    %9 = vector.load %arg3[%c0_15, %c0_16, %c0_17] : memref<1x8x128xf32, #tpu.memory_space<vmem>>, vector<1x8x128xf32>
    %10 = vector.shape_cast %9 : vector<1x8x128xf32> to vector<8x128xf32>
    %cst = arith.constant dense<0.000000e+00> : vector<8x128xf32>
    %11 = tpu.matmul %6, %0, %cst {dimension_numbers = #tpu.dot_dimension_numbers<[1], [0], [0], [1], [0, 0, 1, 1], [], []>} : vector<8x128xf32>, vector<128x128xf32>, vector<8x128xf32> -> vector<8x128xf32>
    %cst_18 = arith.constant 3.125000e-02 : f32
    %12 = vector.broadcast %cst_18 : f32 to vector<8x128xf32>
    %13 = arith.mulf %11, %12 : vector<8x128xf32>
    %14 = arith.subf %6, %13 : vector<8x128xf32>
    %15 = arith.mulf %14, %14 : vector<8x128xf32>
    %cst_19 = arith.constant dense<0.000000e+00> : vector<8x128xf32>
    %16 = tpu.matmul %15, %0, %cst_19 {dimension_numbers = #tpu.dot_dimension_numbers<[1], [0], [0], [1], [0, 0, 1, 1], [], []>} : vector<8x128xf32>, vector<128x128xf32>, vector<8x128xf32> -> vector<8x128xf32>
    %cst_20 = arith.constant 3.125000e-02 : f32
    %17 = vector.broadcast %cst_20 : f32 to vector<8x128xf32>
    %18 = arith.mulf %16, %17 : vector<8x128xf32>
    %cst_21 = arith.constant 9.99999974E-6 : f32
    %19 = vector.broadcast %cst_21 : f32 to vector<8x128xf32>
    %20 = arith.addf %18, %19 : vector<8x128xf32>
    %21 = math.rsqrt %20 : vector<8x128xf32>
    %22 = arith.mulf %14, %21 : vector<8x128xf32>
    %23 = vector.broadcast %3 : vector<1x128xf32> to vector<8x128xf32>
    %24 = arith.mulf %22, %23 : vector<8x128xf32>
    %25 = vector.broadcast %4 : vector<1x128xf32> to vector<8x128xf32>
    %26 = arith.addf %24, %25 : vector<8x128xf32>
    %27 = arith.mulf %26, %26 : vector<8x128xf32>
    %cst_22 = arith.constant dense<0.000000e+00> : vector<8x128xf32>
    %28 = tpu.matmul %27, %0, %cst_22 {dimension_numbers = #tpu.dot_dimension_numbers<[1], [0], [0], [1], [0, 0, 1, 1], [], []>} : vector<8x128xf32>, vector<128x128xf32>, vector<8x128xf32> -> vector<8x128xf32>
    %29 = math.sqrt %28 : vector<8x128xf32>
    %cst_23 = arith.constant 9.99999996E-13 : f32
    %30 = vector.broadcast %cst_23 : f32 to vector<8x128xf32>
    %31 = arith.maximumf %29, %30 : vector<8x128xf32>
    %32 = arith.divf %26, %31 : vector<8x128xf32>
    %cst_24 = arith.constant dense<0.000000e+00> : vector<8x128xf32>
    %33 = tpu.matmul %8, %0, %cst_24 {dimension_numbers = #tpu.dot_dimension_numbers<[1], [0], [0], [1], [0, 0, 1, 1], [], []>} : vector<8x128xf32>, vector<128x128xf32>, vector<8x128xf32> -> vector<8x128xf32>
    %cst_25 = arith.constant 3.125000e-02 : f32
    %34 = vector.broadcast %cst_25 : f32 to vector<8x128xf32>
    %35 = arith.mulf %33, %34 : vector<8x128xf32>
    %36 = arith.subf %8, %35 : vector<8x128xf32>
    %37 = arith.mulf %36, %36 : vector<8x128xf32>
    %cst_26 = arith.constant dense<0.000000e+00> : vector<8x128xf32>
    %38 = tpu.matmul %37, %0, %cst_26 {dimension_numbers = #tpu.dot_dimension_numbers<[1], [0], [0], [1], [0, 0, 1, 1], [], []>} : vector<8x128xf32>, vector<128x128xf32>, vector<8x128xf32> -> vector<8x128xf32>
    %cst_27 = arith.constant 3.125000e-02 : f32
    %39 = vector.broadcast %cst_27 : f32 to vector<8x128xf32>
    %40 = arith.mulf %38, %39 : vector<8x128xf32>
    %cst_28 = arith.constant 9.99999974E-6 : f32
    %41 = vector.broadcast %cst_28 : f32 to vector<8x128xf32>
    %42 = arith.addf %40, %41 : vector<8x128xf32>
    %43 = math.rsqrt %42 : vector<8x128xf32>
    %44 = arith.mulf %36, %43 : vector<8x128xf32>
    %45 = vector.broadcast %3 : vector<1x128xf32> to vector<8x128xf32>
    %46 = arith.mulf %44, %45 : vector<8x128xf32>
    %47 = vector.broadcast %4 : vector<1x128xf32> to vector<8x128xf32>
    %48 = arith.addf %46, %47 : vector<8x128xf32>
    %49 = arith.mulf %48, %48 : vector<8x128xf32>
    %cst_29 = arith.constant dense<0.000000e+00> : vector<8x128xf32>
    %50 = tpu.matmul %49, %0, %cst_29 {dimension_numbers = #tpu.dot_dimension_numbers<[1], [0], [0], [1], [0, 0, 1, 1], [], []>} : vector<8x128xf32>, vector<128x128xf32>, vector<8x128xf32> -> vector<8x128xf32>
    %51 = math.sqrt %50 : vector<8x128xf32>
    %cst_30 = arith.constant 9.99999996E-13 : f32
    %52 = vector.broadcast %cst_30 : f32 to vector<8x128xf32>
    %53 = arith.maximumf %51, %52 : vector<8x128xf32>
    %54 = arith.divf %48, %53 : vector<8x128xf32>
    %cst_31 = arith.constant dense<0.000000e+00> : vector<8x128xf32>
    %55 = tpu.matmul %10, %0, %cst_31 {dimension_numbers = #tpu.dot_dimension_numbers<[1], [0], [0], [1], [0, 0, 1, 1], [], []>} : vector<8x128xf32>, vector<128x128xf32>, vector<8x128xf32> -> vector<8x128xf32>
    %cst_32 = arith.constant 3.125000e-02 : f32
    %56 = vector.broadcast %cst_32 : f32 to vector<8x128xf32>
    %57 = arith.mulf %55, %56 : vector<8x128xf32>
    %58 = arith.subf %10, %57 : vector<8x128xf32>
    %59 = arith.mulf %58, %58 : vector<8x128xf32>
    %cst_33 = arith.constant dense<0.000000e+00> : vector<8x128xf32>
    %60 = tpu.matmul %59, %0, %cst_33 {dimension_numbers = #tpu.dot_dimension_numbers<[1], [0], [0], [1], [0, 0, 1, 1], [], []>} : vector<8x128xf32>, vector<128x128xf32>, vector<8x128xf32> -> vector<8x128xf32>
    %cst_34 = arith.constant 3.125000e-02 : f32
    %61 = vector.broadcast %cst_34 : f32 to vector<8x128xf32>
    %62 = arith.mulf %60, %61 : vector<8x128xf32>
    %cst_35 = arith.constant 9.99999974E-6 : f32
    %63 = vector.broadcast %cst_35 : f32 to vector<8x128xf32>
    %64 = arith.addf %62, %63 : vector<8x128xf32>
    %65 = math.rsqrt %64 : vector<8x128xf32>
    %66 = arith.mulf %58, %65 : vector<8x128xf32>
    %67 = vector.broadcast %3 : vector<1x128xf32> to vector<8x128xf32>
    %68 = arith.mulf %66, %67 : vector<8x128xf32>
    %69 = vector.broadcast %4 : vector<1x128xf32> to vector<8x128xf32>
    %70 = arith.addf %68, %69 : vector<8x128xf32>
    %cst_36 = arith.constant dense<0.000000e+00> : vector<8x256xf32>
    %71 = tpu.matmul %32, %2, %cst_36 {dimension_numbers = #tpu.dot_dimension_numbers<[1], [0], [0], [1], [0, 0, 1, 1], [], []>} : vector<8x128xf32>, vector<128x256xf32>, vector<8x256xf32> -> vector<8x256xf32>
    %cst_37 = arith.constant -1.500000e+01 : f32
    %cst_38 = arith.constant 1.500000e+01 : f32
    %72 = vector.broadcast %cst_37 : f32 to vector<8x256xf32>
    %73 = arith.maximumf %72, %71 : vector<8x256xf32>
    %74 = vector.broadcast %cst_38 : f32 to vector<8x256xf32>
    %75 = arith.minimumf %74, %73 : vector<8x256xf32>
    %cst_39 = arith.constant -2.30258512 : f32
    %76 = vector.broadcast %cst_39 : f32 to vector<8x256xf32>
    %77 = arith.addf %75, %76 : vector<8x256xf32>
    %78 = math.exp %77 : vector<8x256xf32>
    %cst_40 = arith.constant dense<0.000000e+00> : vector<8x256xf32>
    %79 = tpu.matmul %54, %2, %cst_40 {dimension_numbers = #tpu.dot_dimension_numbers<[1], [0], [0], [1], [0, 0, 1, 1], [], []>} : vector<8x128xf32>, vector<128x256xf32>, vector<8x256xf32> -> vector<8x256xf32>
    %cst_41 = arith.constant -1.500000e+01 : f32
    %cst_42 = arith.constant 1.500000e+01 : f32
    %80 = vector.broadcast %cst_41 : f32 to vector<8x256xf32>
    %81 = arith.maximumf %80, %79 : vector<8x256xf32>
    %82 = vector.broadcast %cst_42 : f32 to vector<8x256xf32>
    %83 = arith.minimumf %82, %81 : vector<8x256xf32>
    %cst_43 = arith.constant -2.30258512 : f32
    %84 = vector.broadcast %cst_43 : f32 to vector<8x256xf32>
    %85 = arith.addf %83, %84 : vector<8x256xf32>
    %86 = math.exp %85 : vector<8x256xf32>
    %87 = arith.mulf %78, %86 : vector<8x256xf32>
    %cst_44 = arith.constant dense<0.000000e+00> : vector<8x128xf32>
    %88 = tpu.matmul %87, %1, %cst_44 {dimension_numbers = #tpu.dot_dimension_numbers<[1], [0], [0], [1], [0, 0, 1, 1], [], []>} : vector<8x256xf32>, vector<256x128xf32>, vector<8x128xf32> -> vector<8x128xf32>
    %cst_45 = arith.constant 9.99999997E-7 : f32
    %89 = vector.broadcast %cst_45 : f32 to vector<8x128xf32>
    %90 = arith.maximumf %88, %89 : vector<8x128xf32>
    %91 = tpu.reciprocal %90 {approx = true} : vector<8x128xf32> -> vector<8x128xf32>
    %cst_46 = arith.constant 0.00999999977 : f32
    %92 = vector.broadcast %cst_46 : f32 to vector<8x128xf32>
    %93 = arith.mulf %91, %92 : vector<8x128xf32>
    %cst_47 = arith.constant dense<0.000000e+00> : vector<256x128xf32>
    %94 = tpu.matmul %86, %70, %cst_47 {dimension_numbers = #tpu.dot_dimension_numbers<[0], [0], [1], [1], [0, 1, 1, 1], [], []>} : vector<8x256xf32>, vector<8x128xf32>, vector<256x128xf32> -> vector<256x128xf32>
    %95 = arith.mulf %94, %1 : vector<256x128xf32>
    %cst_48 = arith.constant dense<0.000000e+00> : vector<8x128xf32>
    %96 = tpu.matmul %78, %95, %cst_48 {dimension_numbers = #tpu.dot_dimension_numbers<[1], [0], [0], [1], [0, 0, 1, 1], [], []>} : vector<8x256xf32>, vector<256x128xf32>, vector<8x128xf32> -> vector<8x128xf32>
    %c0_49 = arith.constant 0 : index
    %c0_50 = arith.constant 0 : index
    %97 = vector.load %arg10[%c0_49, %c0_50] : memref<8x128xf32, #tpu.memory_space<vmem>>, vector<8x128xf32>
    tpu.vector_store %arg10[%c0_49, %c0_50], %96 {strides = array<i32>} : memref<8x128xf32, #tpu.memory_space<vmem>>, vector<8x128xf32>,
    %c0_51 = arith.constant 0 : index
    %c0_52 = arith.constant 0 : index
    %98 = vector.load %arg10[%c0_51, %c0_52] : memref<8x128xf32, #tpu.memory_space<vmem>>, vector<8x128xf32>
    %99 = arith.mulf %98, %93 : vector<8x128xf32>
    %cst_53 = arith.constant dense<0.000000e+00> : vector<8x128xf32>
    %100 = tpu.matmul %99, %0, %cst_53 {dimension_numbers = #tpu.dot_dimension_numbers<[1], [0], [0], [1], [0, 0, 1, 1], [], []>} : vector<8x128xf32>, vector<128x128xf32>, vector<8x128xf32> -> vector<8x128xf32>
    %cst_54 = arith.constant 3.125000e-02 : f32
    %101 = vector.broadcast %cst_54 : f32 to vector<8x128xf32>
    %102 = arith.mulf %100, %101 : vector<8x128xf32>
    %103 = arith.subf %99, %102 : vector<8x128xf32>
    %104 = arith.mulf %103, %103 : vector<8x128xf32>
    %cst_55 = arith.constant dense<0.000000e+00> : vector<8x128xf32>
    %105 = tpu.matmul %104, %0, %cst_55 {dimension_numbers = #tpu.dot_dimension_numbers<[1], [0], [0], [1], [0, 0, 1, 1], [], []>} : vector<8x128xf32>, vector<128x128xf32>, vector<8x128xf32> -> vector<8x128xf32>
    %cst_56 = arith.constant 3.125000e-02 : f32
    %106 = vector.broadcast %cst_56 : f32 to vector<8x128xf32>
    %107 = arith.mulf %105, %106 : vector<8x128xf32>
    %cst_57 = arith.constant 9.99999974E-6 : f32
    %108 = vector.broadcast %cst_57 : f32 to vector<8x128xf32>
    %109 = arith.addf %107, %108 : vector<8x128xf32>
    %110 = math.rsqrt %109 : vector<8x128xf32>
    %111 = arith.mulf %103, %110 : vector<8x128xf32>
    %112 = vector.broadcast %3 : vector<1x128xf32> to vector<8x128xf32>
    %113 = arith.mulf %111, %112 : vector<8x128xf32>
    %114 = vector.broadcast %4 : vector<1x128xf32> to vector<8x128xf32>
    %115 = arith.addf %113, %114 : vector<8x128xf32>
    %116 = vector.shape_cast %115 : vector<8x128xf32> to vector<1x8x128xf32>
    %c0_58 = arith.constant 0 : index
    %c0_59 = arith.constant 0 : index
    %c0_60 = arith.constant 0 : index
    %117 = vector.load %arg9[%c0_58, %c0_59, %c0_60] : memref<1x8x128xf32, #tpu.memory_space<vmem>>, vector<1x8x128xf32>
    tpu.vector_store %arg9[%c0_58, %c0_59, %c0_60], %116 {strides = array<i32>} : memref<1x8x128xf32, #tpu.memory_space<vmem>>, vector<1x8x128xf32>,
    return
  }
  func.func @transform_0(%arg0: i32) -> (i32, i32, i32) {
    %c0_i32 = arith.constant 0 : i32
    %c0_i32_0 = arith.constant 0 : i32
    %c0_i32_1 = arith.constant 0 : i32
    return %arg0, %c0_i32, %c0_i32_0 : i32, i32, i32
  }
  func.func @transform_1(%arg0: i32) -> (i32, i32, i32) {
    %c0_i32 = arith.constant 0 : i32
    %c0_i32_0 = arith.constant 0 : i32
    %c0_i32_1 = arith.constant 0 : i32
    return %arg0, %c0_i32, %c0_i32_0 : i32, i32, i32
  }
  func.func @transform_2(%arg0: i32) -> (i32, i32, i32) {
    %c0_i32 = arith.constant 0 : i32
    %c0_i32_0 = arith.constant 0 : i32
    %c0_i32_1 = arith.constant 0 : i32
    return %arg0, %c0_i32, %c0_i32_0 : i32, i32, i32
  }
  func.func @transform_3(%arg0: i32) -> (i32, i32) {
    %c0_i32 = arith.constant 0 : i32
    %c0_i32_0 = arith.constant 0 : i32
    %c0_i32_1 = arith.constant 0 : i32
    return %c0_i32, %c0_i32_0 : i32, i32
  }
  func.func @transform_4(%arg0: i32) -> (i32, i32) {
    %c0_i32 = arith.constant 0 : i32
    %c0_i32_0 = arith.constant 0 : i32
    %c0_i32_1 = arith.constant 0 : i32
    return %c0_i32, %c0_i32_0 : i32, i32
  }
  func.func @transform_5(%arg0: i32) -> (i32, i32) {
    %c0_i32 = arith.constant 0 : i32
    %c0_i32_0 = arith.constant 0 : i32
    %c0_i32_1 = arith.constant 0 : i32
    return %c0_i32, %c0_i32_0 : i32, i32
  }
  func.func @transform_6(%arg0: i32) -> (i32, i32) {
    %c0_i32 = arith.constant 0 : i32
    %c0_i32_0 = arith.constant 0 : i32
    %c0_i32_1 = arith.constant 0 : i32
    return %c0_i32, %c0_i32_0 : i32, i32
  }
  func.func @transform_7(%arg0: i32) -> (i32, i32) {
    %c0_i32 = arith.constant 0 : i32
    %c0_i32_0 = arith.constant 0 : i32
    %c0_i32_1 = arith.constant 0 : i32
    return %c0_i32, %c0_i32_0 : i32, i32
  }
  func.func @transform_8(%arg0: i32) -> (i32, i32, i32) {
    %c0_i32 = arith.constant 0 : i32
    %c0_i32_0 = arith.constant 0 : i32
    %c0_i32_1 = arith.constant 0 : i32
    return %arg0, %c0_i32, %c0_i32_0 : i32, i32, i32
  }
}

</mosaic_0001>

<llo_original>
// kernel: tpu_custom_call.1
$region0: #{tpu_custom_call.1}
  #allocation0 [shape = 'u32[]', space=smem, size = 0x4, offset = 0x4, fixed_abs, tag = 'smem constant byte address 0x4 - core index']
  #allocation1 [shape = 'u32[144,128]{1,0:T(1,128)}', space=vmem, size = 0x12000, scoped, tag = 'internal scratch']
  #allocation2 [shape = 'f32[8,128]{1,0:T(8,128)}', space=vmem, size = 0x1000, scoped, tag = 'scratch operand']
  %s0 = inlined_call_operand.hbm [shape: f32[2,8,128], index: 0, kind: input, shape index: {}]
  %s1 = inlined_call_operand.hbm [shape: f32[2,8,128], index: 1, kind: input, shape index: {}]
  %s2 = inlined_call_operand.hbm [shape: f32[2,8,128], index: 2, kind: input, shape index: {}]
  %s3 = inlined_call_operand.hbm [shape: f32[128,256], index: 3, kind: input, shape index: {}]
  %s4 = inlined_call_operand.hbm [shape: f32[128,128], index: 4, kind: input, shape index: {}]
  %s5 = inlined_call_operand.hbm [shape: f32[256,128], index: 5, kind: input, shape index: {}]
  %s6 = inlined_call_operand.vmem [shape: f32[1,128], index: 6, kind: input, shape index: {}]
  %s7 = inlined_call_operand.vmem [shape: f32[1,128], index: 7, kind: input, shape index: {}]
  %s8 = inlined_call_operand.hbm [shape: f32[2,8,128], index: 8, kind: output, shape index: {}]
  %s9 = sld [smem:[#allocation0]]
  $region89: #{tpu_custom_call.1} parent=0
    _
  %s11 = ssub.s32 1, %s9
  %s12 = scalar_select 0, %s11, %s9
  $region1: #{tpu_custom_call.1} parent=0
    #allocation3 [shape = 'u8[8192]{0}', space=vmem, size = 0x2000, scoped, tag = 'input window, operand 0']
    #allocation4 [shape = 's32[2]{0}', space=sflag, size = 0x8, scoped, tag = 'scoped memory for tpu_custom_call.1']
    #allocation5 [shape = 's32[2]{0}', space=sflag, size = 0x8, scoped, tag = 'scoped memory for tpu_custom_call.1']
    #allocation6 [shape = 'u8[8192]{0}', space=vmem, size = 0x2000, scoped, tag = 'input window, operand 1']
    #allocation7 [shape = 's32[2]{0}', space=sflag, size = 0x8, scoped, tag = 'scoped memory for tpu_custom_call.1']
    #allocation8 [shape = 'u8[8192]{0}', space=vmem, size = 0x2000, scoped, tag = 'input window, operand 2']
    #allocation9 [shape = 'u8[131072]{0}', space=vmem, size = 0x20000, scoped, tag = 'input window, operand 3, single buffered']
    #allocation10 [shape = 's32[1]{0}', space=sflag, size = 0x4, scoped, tag = 'scoped memory for tpu_custom_call.1']
    #allocation11 [shape = 'u8[65536]{0}', space=vmem, size = 0x10000, scoped, tag = 'input window, operand 4, single buffered']
    #allocation12 [shape = 'u8[131072]{0}', space=vmem, size = 0x20000, scoped, tag = 'input window, operand 5, single buffered']
    #allocation13 [shape = 's32[1]{0}', space=sflag, size = 0x4, scoped, tag = 'scoped memory for tpu_custom_call.1']
    #allocation14 [shape = 'u8[8192]{0}', space=vmem, size = 0x2000, scoped, tag = 'output window, operand 0']
    %13 = vsyncpa [#allocation4], 0
    %s14 = scalar_lea.sflag [#allocation4], 1
    %15 = vsyncpa %s14, 0
    %16 = vsyncpa [#allocation7], 0
    %s17 = scalar_lea.sflag [#allocation7], 1
    %18 = vsyncpa %s17, 0
    %19 = vsyncpa [#allocation10], 0
    %20 = vsyncpa [#allocation13], 0
    %21 = vsyncpa [#allocation5], 0
    %s22 = scalar_lea.sflag [#allocation5], 1
    %23 = vsyncpa %s22, 0
    loop: start=0, step=1, limit=4
    $region2: #{tpu_custom_call.1} parent=1 // loop_pre_header
      _
    $region3: #{tpu_custom_call.1} parent=1 // loop_header
      %s25 = sphi 0, %s29
      %p26 = scmp.ge.s32.totalorder %s25, 4
      %s35 = sphi 0, %s37
      %s38 = sphi 0, %s35
      %s39 = sphi 0, %s38
      %s55 = sphi 0, %s39
      %s61 = sphi 0, %s63
      %s64 = sphi 0, %s61
      %s65 = sphi 0, %s64
      %s81 = sphi 0, %s65
      %s87 = sphi 0, %s89
      %s90 = sphi 0, %s87
      %s91 = sphi 0, %s90
      %s107 = sphi 0, %s91
      %s111 = sphi 0, %s111
      %s113 = sphi 0, %s111
      %s114 = sphi 0, %s113
      %s128 = sphi 0, %s114
      %s132 = sphi 0, %s132
      %s134 = sphi 0, %s132
      %s135 = sphi 0, %s134
      %s149 = sphi 0, %s135
      %s153 = sphi 0, %s153
      %s155 = sphi 0, %s153
      %s156 = sphi 0, %s155
      %s170 = sphi 0, %s156
      %s174 = sphi 0, %s174
      %s176 = sphi 0, %s174
      %s177 = sphi 0, %s176
      %s191 = sphi 0, %s177
      %s195 = sphi 0, %s195
      %s197 = sphi 0, %s195
      %s198 = sphi 0, %s197
      %s212 = sphi 0, %s198
      %s218 = sphi 0, %s220
      %s221 = sphi 0, %s218
      %s222 = sphi 0, %s221
      %s238 = sphi 0, %s222
    $region4: #{tpu_custom_call.1} parent=1 // loop_header_branch
      %28 = sbr.rel (%p26) target = $region8
    $region5: #{tpu_custom_call.1} parent=1 // loop_body
      %s30 = ssub.s32 %s25, 1
      %s31 = ssub.s32 %s25, 2
      %s32 = sadd.s32 %s25, 1
      %s33 = ssub.s32 %s25, %s32
      %p34 = scmp.eq.s32.totalorder %s33, 0
      %s36 = sadd.s32 %s35, 1
      %s37 = scalar_select %p34, %s35, %s36
      %p40 = pneg %p34
      %p41 = scmp.eq.s32.totalorder %s25, 1
      %p42 = por %p40, %p41
      %p43 = scmp.ne.s32.totalorder %s35, %s38
      %p44 = scmp.eq.s32.totalorder %s25, 0
      %p45 = por %p43, %p44
      %p46 = scmp.ne.s32.totalorder %s35, %s38
      %p47 = scmp.eq.s32.totalorder %s30, 1
      %p48 = por %p46, %p47
      %p49 = scmp.ne.s32.totalorder %s38, %s39
      %p50 = scmp.eq.s32.totalorder %s30, 0
      %p51 = por %p49, %p50
      %p52 = scmp.ne.s32.totalorder %s38, %s39
      %p53 = scmp.eq.s32.totalorder %s31, 1
      %p54 = por %p52, %p53
      %p56 = scmp.ne.s32.totalorder %s39, %s55
      %p57 = scmp.eq.s32.totalorder %s31, 0
      %p58 = por %p56, %p57
      %s59 = ssub.s32 %s25, %s32
      %p60 = scmp.eq.s32.totalorder %s59, 0
      %s62 = sadd.s32 %s61, 1
      %s63 = scalar_select %p60, %s61, %s62
      %p66 = pneg %p60
      %p67 = scmp.eq.s32.totalorder %s25, 1
      %p68 = por %p66, %p67
      %p69 = scmp.ne.s32.totalorder %s61, %s64
      %p70 = scmp.eq.s32.totalorder %s25, 0
      %p71 = por %p69, %p70
      %p72 = scmp.ne.s32.totalorder %s61, %s64
      %p73 = scmp.eq.s32.totalorder %s30, 1
      %p74 = por %p72, %p73
      %p75 = scmp.ne.s32.totalorder %s64, %s65
      %p76 = scmp.eq.s32.totalorder %s30, 0
      %p77 = por %p75, %p76
      %p78 = scmp.ne.s32.totalorder %s64, %s65
      %p79 = scmp.eq.s32.totalorder %s31, 1
      %p80 = por %p78, %p79
      %p82 = scmp.ne.s32.totalorder %s65, %s81
      %p83 = scmp.eq.s32.totalorder %s31, 0
      %p84 = por %p82, %p83
      %s85 = ssub.s32 %s25, %s32
      %p86 = scmp.eq.s32.totalorder %s85, 0
      %s88 = sadd.s32 %s87, 1
      %s89 = scalar_select %p86, %s87, %s88
      %p92 = pneg %p86
      %p93 = scmp.eq.s32.totalorder %s25, 1
      %p94 = por %p92, %p93
      %p95 = scmp.ne.s32.totalorder %s87, %s90
      %p96 = scmp.eq.s32.totalorder %s25, 0
      %p97 = por %p95, %p96
      %p98 = scmp.ne.s32.totalorder %s87, %s90
      %p99 = scmp.eq.s32.totalorder %s30, 1
      %p100 = por %p98, %p99
      %p101 = scmp.ne.s32.totalorder %s90, %s91
      %p102 = scmp.eq.s32.totalorder %s30, 0
      %p103 = por %p101, %p102
      %p104 = scmp.ne.s32.totalorder %s90, %s91
      %p105 = scmp.eq.s32.totalorder %s31, 1
      %p106 = por %p104, %p105
      %p108 = scmp.ne.s32.totalorder %s91, %s107
      %p109 = scmp.eq.s32.totalorder %s31, 0
      %p110 = por %p108, %p109
      %s112 = sadd.s32 %s111, 1
      %p115 = scmp.eq.s32.totalorder %s25, 1
      %p116 = scmp.ne.s32.totalorder %s111, %s113
      %p117 = scmp.eq.s32.totalorder %s25, 0
      %p118 = por %p116, %p117
      %p119 = scmp.ne.s32.totalorder %s111, %s113
      %p120 = scmp.eq.s32.totalorder %s30, 1
      %p121 = por %p119, %p120
      %p122 = scmp.ne.s32.totalorder %s113, %s114
      %p123 = scmp.eq.s32.totalorder %s30, 0
      %p124 = por %p122, %p123
      %p125 = scmp.ne.s32.totalorder %s113, %s114
      %p126 = scmp.eq.s32.totalorder %s31, 1
      %p127 = por %p125, %p126
      %p129 = scmp.ne.s32.totalorder %s114, %s128
      %p130 = scmp.eq.s32.totalorder %s31, 0
      %p131 = por %p129, %p130
      %s133 = sadd.s32 %s132, 1
      %p136 = scmp.eq.s32.totalorder %s25, 1
      %p137 = scmp.ne.s32.totalorder %s132, %s134
      %p138 = scmp.eq.s32.totalorder %s25, 0
      %p139 = por %p137, %p138
      %p140 = scmp.ne.s32.totalorder %s132, %s134
      %p141 = scmp.eq.s32.totalorder %s30, 1
      %p142 = por %p140, %p141
      %p143 = scmp.ne.s32.totalorder %s134, %s135
      %p144 = scmp.eq.s32.totalorder %s30, 0
      %p145 = por %p143, %p144
      %p146 = scmp.ne.s32.totalorder %s134, %s135
      %p147 = scmp.eq.s32.totalorder %s31, 1
      %p148 = por %p146, %p147
      %p150 = scmp.ne.s32.totalorder %s135, %s149
      %p151 = scmp.eq.s32.totalorder %s31, 0
      %p152 = por %p150, %p151
      %s154 = sadd.s32 %s153, 1
      %p157 = scmp.eq.s32.totalorder %s25, 1
      %p158 = scmp.ne.s32.totalorder %s153, %s155
      %p159 = scmp.eq.s32.totalorder %s25, 0
      %p160 = por %p158, %p159
      %p161 = scmp.ne.s32.totalorder %s153, %s155
      %p162 = scmp.eq.s32.totalorder %s30, 1
      %p163 = por %p161, %p162
      %p164 = scmp.ne.s32.totalorder %s155, %s156
      %p165 = scmp.eq.s32.totalorder %s30, 0
      %p166 = por %p164, %p165
      %p167 = scmp.ne.s32.totalorder %s155, %s156
      %p168 = scmp.eq.s32.totalorder %s31, 1
      %p169 = por %p167, %p168
      %p171 = scmp.ne.s32.totalorder %s156, %s170
      %p172 = scmp.eq.s32.totalorder %s31, 0
      %p173 = por %p171, %p172
      %s175 = sadd.s32 %s174, 1
      %p178 = scmp.eq.s32.totalorder %s25, 1
      %p179 = scmp.ne.s32.totalorder %s174, %s176
      %p180 = scmp.eq.s32.totalorder %s25, 0
      %p181 = por %p179, %p180
      %p182 = scmp.ne.s32.totalorder %s174, %s176
      %p183 = scmp.eq.s32.totalorder %s30, 1
      %p184 = por %p182, %p183
      %p185 = scmp.ne.s32.totalorder %s176, %s177
      %p186 = scmp.eq.s32.totalorder %s30, 0
      %p187 = por %p185, %p186
      %p188 = scmp.ne.s32.totalorder %s176, %s177
      %p189 = scmp.eq.s32.totalorder %s31, 1
      %p190 = por %p188, %p189
      %p192 = scmp.ne.s32.totalorder %s177, %s191
      %p193 = scmp.eq.s32.totalorder %s31, 0
      %p194 = por %p192, %p193
      %s196 = sadd.s32 %s195, 1
      %p199 = scmp.eq.s32.totalorder %s25, 1
      %p200 = scmp.ne.s32.totalorder %s195, %s197
      %p201 = scmp.eq.s32.totalorder %s25, 0
      %p202 = por %p200, %p201
      %p203 = scmp.ne.s32.totalorder %s195, %s197
      %p204 = scmp.eq.s32.totalorder %s30, 1
      %p205 = por %p203, %p204
      %p206 = scmp.ne.s32.totalorder %s197, %s198
      %p207 = scmp.eq.s32.totalorder %s30, 0
      %p208 = por %p206, %p207
      %p209 = scmp.ne.s32.totalorder %s197, %s198
      %p210 = scmp.eq.s32.totalorder %s31, 1
      %p211 = por %p209, %p210
      %p213 = scmp.ne.s32.totalorder %s198, %s212
      %p214 = scmp.eq.s32.totalorder %s31, 0
      %p215 = por %p213, %p214
      %s216 = ssub.s32 %s25, %s32
      %p217 = scmp.eq.s32.totalorder %s216, 0
      %s219 = sadd.s32 %s218, 1
      %s220 = scalar_select %p217, %s218, %s219
      %p223 = pneg %p217
      %p224 = scmp.eq.s32.totalorder %s25, 1
      %p225 = por %p223, %p224
      %p226 = scmp.ne.s32.totalorder %s218, %s221
      %p227 = scmp.eq.s32.totalorder %s25, 0
      %p228 = por %p226, %p227
      %p229 = scmp.ne.s32.totalorder %s218, %s221
      %p230 = scmp.eq.s32.totalorder %s30, 1
      %p231 = por %p229, %p230
      %p232 = scmp.ne.s32.totalorder %s221, %s222
      %p233 = scmp.eq.s32.totalorder %s30, 0
      %p234 = por %p232, %p233
      %p235 = scmp.ne.s32.totalorder %s221, %s222
      %p236 = scmp.eq.s32.totalorder %s31, 1
      %p237 = por %p235, %p236
      %p239 = scmp.ne.s32.totalorder %s222, %s238
      %p240 = scmp.eq.s32.totalorder %s31, 0
      %p241 = por %p239, %p240
      %p242 = scmp.le.s32.totalorder 1, %s25
      %p243 = scmp.lt.s32.totalorder %s25, 3
      %p244 = pnand %p242, %p243
      %p245 = pneg %p244
      // Predicated region
      $region9: #{tpu_custom_call.1} parent=5 // pred_check
        _
      $region10: #{tpu_custom_call.1} parent=5 // pred_check_branch
        %247 = sbr.rel (%p244) target = $region12
      $region11: #{tpu_custom_call.1} parent=5 // pred_region
        %s248 = ssub.s32 %s25, 1
        // Predicated region
        $region13: #{tpu_custom_call.1} parent=11 // pred_check
          %p249 = pneg %p124
        $region14: #{tpu_custom_call.1} parent=11 // pred_check_branch
          %251 = sbr.rel (%p249) target = $region16
        $region15: #{tpu_custom_call.1} parent=11 // pred_region
          %s253 = ssub.s32 4096, 4096
          %254 = vsyncadd [#allocation10], %s253
          %s255 = sshll.u32 [#allocation9], 4
          %s256 = int_to_ptr.vmem [resolvable:$true] %s255
          %261 = dma.hbm_to_vmem [thread:$0]  %s3, 4096, %s256, [#allocation10], 256, 256, 16
        $region16: #{tpu_custom_call.1} parent=11 // pred_fallthru
          _
        // Predicated region
        $region17: #{tpu_custom_call.1} parent=11 // pred_check
          %p262 = pneg %p145
        $region18: #{tpu_custom_call.1} parent=11 // pred_check_branch
          %264 = sbr.rel (%p262) target = $region20
        $region19: #{tpu_custom_call.1} parent=11 // pred_region
          %s266 = ssub.s32 2048, 2048
          %267 = vsyncadd [#allocation10], %s266
          %s268 = sshll.u32 [#allocation11], 4
          %s269 = int_to_ptr.vmem [resolvable:$true] %s268
          %274 = dma.hbm_to_vmem [thread:$0]  %s4, 2048, %s269, [#allocation10], 128, 128, 8
        $region20: #{tpu_custom_call.1} parent=11 // pred_fallthru
          _
        // Predicated region
        $region21: #{tpu_custom_call.1} parent=11 // pred_check
          %p275 = pneg %p166
        $region22: #{tpu_custom_call.1} parent=11 // pred_check_branch
          %277 = sbr.rel (%p275) target = $region24
        $region23: #{tpu_custom_call.1} parent=11 // pred_region
          %s279 = ssub.s32 4096, 4096
          %280 = vsyncadd [#allocation13], %s279
          %s281 = sshll.u32 [#allocation12], 4
          %s282 = int_to_ptr.vmem [resolvable:$true] %s281
          %287 = dma.hbm_to_vmem [thread:$0]  %s5, 4096, %s282, [#allocation13], 128, 128, 8
        $region24: #{tpu_custom_call.1} parent=11 // pred_fallthru
          _
        // Predicated region
        $region25: #{tpu_custom_call.1} parent=11 // pred_check
          %p288 = pneg %p187
        $region26: #{tpu_custom_call.1} parent=11 // pred_check_branch
          %290 = sbr.rel (%p288) target = $region28
        $region27: #{tpu_custom_call.1} parent=11 // pred_region
          _
        $region28: #{tpu_custom_call.1} parent=11 // pred_fallthru
          _
        // Predicated region
        $region29: #{tpu_custom_call.1} parent=11 // pred_check
          %p291 = pneg %p208
        $region30: #{tpu_custom_call.1} parent=11 // pred_check_branch
          %293 = sbr.rel (%p291) target = $region32
        $region31: #{tpu_custom_call.1} parent=11 // pred_region
          _
        $region32: #{tpu_custom_call.1} parent=11 // pred_fallthru
          _
      $region12: #{tpu_custom_call.1} parent=5 // pred_fallthru
        _
      %p294 = scmp.lt.s32.totalorder %s25, 2
      // Predicated region
      $region33: #{tpu_custom_call.1} parent=5 // pred_check
        %p295 = pneg %p294
      $region34: #{tpu_custom_call.1} parent=5 // pred_check_branch
        %297 = sbr.rel (%p295) target = $region36
      $region35: #{tpu_custom_call.1} parent=5 // pred_region
        // Predicated region
        $region37: #{tpu_custom_call.1} parent=35 // pred_check
          %p298 = pneg %p45
        $region38: #{tpu_custom_call.1} parent=35 // pred_check_branch
          %300 = sbr.rel (%p298) target = $region40
        $region39: #{tpu_custom_call.1} parent=35 // pred_region
          %s301 = sand.u32 %s35, 1
          %s302 = scalar_lea.sflag [#allocation4], %s301
          %s303 = sand.u32 %s35, 1
          %s304 = smul.addr %s303, 8
          %s305 = scalar_lea.vmem [#allocation3], %s304
          %s307 = ssub.s32 128, 128
          %308 = vsyncadd %s302, %s307
          %s309 = smul.addr %s25, 128
          %s310 = scalar_lea.hbm %s0, %s309
          %s312 = sshll.u32 %s305, 4
          %s313 = int_to_ptr.vmem [resolvable:$true] %s312
          %315 = dma.hbm_to_vmem [thread:$0]  %s310, 128, %s313, %s302
        $region40: #{tpu_custom_call.1} parent=35 // pred_fallthru
          _
        // Predicated region
        $region41: #{tpu_custom_call.1} parent=35 // pred_check
          %p316 = pneg %p71
        $region42: #{tpu_custom_call.1} parent=35 // pred_check_branch
          %318 = sbr.rel (%p316) target = $region44
        $region43: #{tpu_custom_call.1} parent=35 // pred_region
          %s319 = sand.u32 %s25, 1
          %s320 = scalar_lea.sflag [#allocation7], %s319
          %s321 = sand.u32 %s61, 1
          %s322 = smul.addr %s321, 8
          %s323 = scalar_lea.vmem [#allocation6], %s322
          %s325 = ssub.s32 128, 128
          %326 = vsyncadd %s320, %s325
          %s327 = smul.addr %s25, 128
          %s328 = scalar_lea.hbm %s1, %s327
          %s330 = sshll.u32 %s323, 4
          %s331 = int_to_ptr.vmem [resolvable:$true] %s330
          %333 = dma.hbm_to_vmem [thread:$0]  %s328, 128, %s331, %s320
        $region44: #{tpu_custom_call.1} parent=35 // pred_fallthru
          _
        // Predicated region
        $region45: #{tpu_custom_call.1} parent=35 // pred_check
          %p334 = pneg %p97
        $region46: #{tpu_custom_call.1} parent=35 // pred_check_branch
          %336 = sbr.rel (%p334) target = $region48
        $region47: #{tpu_custom_call.1} parent=35 // pred_region
          %s337 = sand.u32 %s25, 1
          %s338 = scalar_lea.sflag [#allocation7], %s337
          %s339 = sand.u32 %s87, 1
          %s340 = smul.addr %s339, 8
          %s341 = scalar_lea.vmem [#allocation8], %s340
          %s343 = ssub.s32 128, 128
          %344 = vsyncadd %s338, %s343
          %s345 = smul.addr %s25, 128
          %s346 = scalar_lea.hbm %s2, %s345
          %s348 = sshll.u32 %s341, 4
          %s349 = int_to_ptr.vmem [resolvable:$true] %s348
          %351 = dma.hbm_to_vmem [thread:$0]  %s346, 128, %s349, %s338
        $region48: #{tpu_custom_call.1} parent=35 // pred_fallthru
          _
      $region36: #{tpu_custom_call.1} parent=5 // pred_fallthru
        _
      %p352 = scmp.le.s32.totalorder 1, %s25
      %p353 = scmp.lt.s32.totalorder %s25, 3
      %p354 = pnand %p352, %p353
      %p355 = pneg %p354
      // Predicated region
      $region49: #{tpu_custom_call.1} parent=5 // pred_check
        _
      $region50: #{tpu_custom_call.1} parent=5 // pred_check_branch
        %357 = sbr.rel (%p354) target = $region52
      $region51: #{tpu_custom_call.1} parent=5 // pred_region
        %s358 = ssub.s32 %s25, 1
        %s359 = sand.u32 %s38, 1
        %s360 = scalar_lea.sflag [#allocation4], %s359
        %s361 = sand.u32 %s38, 1
        %s362 = smul.addr %s361, 8
        %s363 = scalar_lea.vmem [#allocation3], %s362
        // Predicated region
        $region53: #{tpu_custom_call.1} parent=51 // pred_check
          %p364 = pneg %p51
        $region54: #{tpu_custom_call.1} parent=51 // pred_check_branch
          %366 = sbr.rel (%p364) target = $region56
        $region55: #{tpu_custom_call.1} parent=51 // pred_region
          %367 = dma.done %s360, 128
        $region56: #{tpu_custom_call.1} parent=51 // pred_fallthru
          _
        %s368 = sand.u32 %s30, 1
        %s369 = scalar_lea.sflag [#allocation7], %s368
        %s370 = sand.u32 %s64, 1
        %s371 = smul.addr %s370, 8
        %s372 = scalar_lea.vmem [#allocation6], %s371
        // Predicated region
        $region57: #{tpu_custom_call.1} parent=51 // pred_check
          %p373 = pneg %p77
        $region58: #{tpu_custom_call.1} parent=51 // pred_check_branch
          %375 = sbr.rel (%p373) target = $region60
        $region59: #{tpu_custom_call.1} parent=51 // pred_region
          %376 = dma.done %s369, 128
        $region60: #{tpu_custom_call.1} parent=51 // pred_fallthru
          _
        %s377 = sand.u32 %s30, 1
        %s378 = scalar_lea.sflag [#allocation7], %s377
        %s379 = sand.u32 %s90, 1
        %s380 = smul.addr %s379, 8
        %s381 = scalar_lea.vmem [#allocation8], %s380
        // Predicated region
        $region61: #{tpu_custom_call.1} parent=51 // pred_check
          %p382 = pneg %p103
        $region62: #{tpu_custom_call.1} parent=51 // pred_check_branch
          %384 = sbr.rel (%p382) target = $region64
        $region63: #{tpu_custom_call.1} parent=51 // pred_region
          %385 = dma.done %s378, 128
        $region64: #{tpu_custom_call.1} parent=51 // pred_fallthru
          _
        // Predicated region
        $region65: #{tpu_custom_call.1} parent=51 // pred_check
          %p386 = pneg %p124
        $region66: #{tpu_custom_call.1} parent=51 // pred_check_branch
          %388 = sbr.rel (%p386) target = $region68
        $region67: #{tpu_custom_call.1} parent=51 // pred_region
          %389 = dma.done [#allocation10], 4096
        $region68: #{tpu_custom_call.1} parent=51 // pred_fallthru
          _
        // Predicated region
        $region69: #{tpu_custom_call.1} parent=51 // pred_check
          %p390 = pneg %p145
        $region70: #{tpu_custom_call.1} parent=51 // pred_check_branch
          %392 = sbr.rel (%p390) target = $region72
        $region71: #{tpu_custom_call.1} parent=51 // pred_region
          %393 = dma.done [#allocation10], 2048
        $region72: #{tpu_custom_call.1} parent=51 // pred_fallthru
          _
        // Predicated region
        $region73: #{tpu_custom_call.1} parent=51 // pred_check
          %p394 = pneg %p166
        $region74: #{tpu_custom_call.1} parent=51 // pred_check_branch
          %396 = sbr.rel (%p394) target = $region76
        $region75: #{tpu_custom_call.1} parent=51 // pred_region
          %397 = dma.done [#allocation13], 4096
        $region76: #{tpu_custom_call.1} parent=51 // pred_fallthru
          _
        %s398 = sand.u32 %s38, 1
        %s399 = scalar_lea.sflag [#allocation4], %s398
        %s400 = sand.u32 %s38, 1
        %s401 = smul.addr %s400, 8
        %s402 = scalar_lea.vmem [#allocation3], %s401
        %p403 = pneg %p51
        %p404 = pneg %p48
        %s405 = sand.u32 %s30, 1
        %s406 = scalar_lea.sflag [#allocation7], %s405
        %s407 = sand.u32 %s64, 1
        %s408 = smul.addr %s407, 8
        %s409 = scalar_lea.vmem [#allocation6], %s408
        %p410 = pneg %p77
        %p411 = pneg %p74
        %s412 = sand.u32 %s30, 1
        %s413 = scalar_lea.sflag [#allocation7], %s412
        %s414 = sand.u32 %s90, 1
        %s415 = smul.addr %s414, 8
        %s416 = scalar_lea.vmem [#allocation8], %s415
        %p417 = pneg %p103
        %p418 = pneg %p100
        %p419 = pneg %p124
        %p420 = pneg %p121
        %p421 = pneg %p145
        %p422 = pneg %p142
        %p423 = pneg %p166
        %p424 = pneg %p163
        %p425 = pneg %p187
        %p426 = pneg %p184
        %p427 = pneg %p208
        %p428 = pneg %p205
        %p429 = pneg %p234
        %p430 = pneg %p231
        %s431 = sand.u32 %s221, 1
        %s432 = scalar_lea.sflag [#allocation5], %s431
        %s433 = sand.u32 %s221, 1
        %s434 = smul.addr %s433, 8
        %s435 = scalar_lea.vmem [#allocation14], %s434
        %v436 = vld [vmem:[#allocation11] sm:$0xff]
        %v437 = vld [vmem:[#allocation11 + $0x8] sm:$0xff]
        %v438 = vld [vmem:[#allocation11 + $0x10] sm:$0xff]
        %v439 = vld [vmem:[#allocation11 + $0x18] sm:$0xff]
        %v440 = vld [vmem:[#allocation11 + $0x20] sm:$0xff]
        %v441 = vld [vmem:[#allocation11 + $0x28] sm:$0xff]
        %v442 = vld [vmem:[#allocation11 + $0x30] sm:$0xff]
        %v443 = vld [vmem:[#allocation11 + $0x38] sm:$0xff]
        %v444 = vld [vmem:[#allocation11 + $0x40] sm:$0xff]
        %v445 = vld [vmem:[#allocation11 + $0x48] sm:$0xff]
        %v446 = vld [vmem:[#allocation11 + $0x50] sm:$0xff]
        %v447 = vld [vmem:[#allocation11 + $0x58] sm:$0xff]
        %v448 = vld [vmem:[#allocation11 + $0x60] sm:$0xff]
        %v449 = vld [vmem:[#allocation11 + $0x68] sm:$0xff]
        %v450 = vld [vmem:[#allocation11 + $0x70] sm:$0xff]
        %v451 = vld [vmem:[#allocation11 + $0x78] sm:$0xff]
        %v452 = vld [vmem:[#allocation12] sm:$0xff]
        %v453 = vld [vmem:[#allocation12 + $0x8] sm:$0xff]
        %v454 = vld [vmem:[#allocation12 + $0x10] sm:$0xff]
        %v455 = vld [vmem:[#allocation12 + $0x18] sm:$0xff]
        %v456 = vld [vmem:[#allocation12 + $0x20] sm:$0xff]
        %v457 = vld [vmem:[#allocation12 + $0x28] sm:$0xff]
        %v458 = vld [vmem:[#allocation12 + $0x30] sm:$0xff]
        %v459 = vld [vmem:[#allocation12 + $0x38] sm:$0xff]
        %v460 = vld [vmem:[#allocation12 + $0x40] sm:$0xff]
        %v461 = vld [vmem:[#allocation12 + $0x48] sm:$0xff]
        %v462 = vld [vmem:[#allocation12 + $0x50] sm:$0xff]
        %v463 = vld [vmem:[#allocation12 + $0x58] sm:$0xff]
        %v464 = vld [vmem:[#allocation12 + $0x60] sm:$0xff]
        %v465 = vld [vmem:[#allocation12 + $0x68] sm:$0xff]
        %v466 = vld [vmem:[#allocation12 + $0x70] sm:$0xff]
        %v467 = vld [vmem:[#allocation12 + $0x78] sm:$0xff]
        %v468 = vld [vmem:[#allocation12 + $0x80] sm:$0xff]
        %v469 = vld [vmem:[#allocation12 + $0x88] sm:$0xff]
        %v470 = vld [vmem:[#allocation12 + $0x90] sm:$0xff]
        %v471 = vld [vmem:[#allocation12 + $0x98] sm:$0xff]
        %v472 = vld [vmem:[#allocation12 + $0xa0] sm:$0xff]
        %v473 = vld [vmem:[#allocation12 + $0xa8] sm:$0xff]
        %v474 = vld [vmem:[#allocation12 + $0xb0] sm:$0xff]
        %v475 = vld [vmem:[#allocation12 + $0xb8] sm:$0xff]
        %v476 = vld [vmem:[#allocation12 + $0xc0] sm:$0xff]
        %v477 = vld [vmem:[#allocation12 + $0xc8] sm:$0xff]
        %v478 = vld [vmem:[#allocation12 + $0xd0] sm:$0xff]
        %v479 = vld [vmem:[#allocation12 + $0xd8] sm:$0xff]
        %v480 = vld [vmem:[#allocation12 + $0xe0] sm:$0xff]
        %v481 = vld [vmem:[#allocation12 + $0xe8] sm:$0xff]
        %v482 = vld [vmem:[#allocation12 + $0xf0] sm:$0xff]
        %v483 = vld [vmem:[#allocation12 + $0xf8] sm:$0xff]
        %v484 = vld [vmem:[#allocation9] sm:$0xff]
        %v485 = vld [vmem:[#allocation9 + $0x8] sm:$0xff]
        %v486 = vld [vmem:[#allocation9 + $0x10] sm:$0xff]
        %v487 = vld [vmem:[#allocation9 + $0x18] sm:$0xff]
        %v488 = vld [vmem:[#allocation9 + $0x20] sm:$0xff]
        %v489 = vld [vmem:[#allocation9 + $0x28] sm:$0xff]
        %v490 = vld [vmem:[#allocation9 + $0x30] sm:$0xff]
        %v491 = vld [vmem:[#allocation9 + $0x38] sm:$0xff]
        %v492 = vld [vmem:[#allocation9 + $0x40] sm:$0xff]
        %v493 = vld [vmem:[#allocation9 + $0x48] sm:$0xff]
        %v494 = vld [vmem:[#allocation9 + $0x50] sm:$0xff]
        %v495 = vld [vmem:[#allocation9 + $0x58] sm:$0xff]
        %v496 = vld [vmem:[#allocation9 + $0x60] sm:$0xff]
        %v497 = vld [vmem:[#allocation9 + $0x68] sm:$0xff]
        %v498 = vld [vmem:[#allocation9 + $0x70] sm:$0xff]
        %v499 = vld [vmem:[#allocation9 + $0x78] sm:$0xff]
        %v500 = vld [vmem:[#allocation9 + $0x80] sm:$0xff]
        %v501 = vld [vmem:[#allocation9 + $0x88] sm:$0xff]
        %v502 = vld [vmem:[#allocation9 + $0x90] sm:$0xff]
        %v503 = vld [vmem:[#allocation9 + $0x98] sm:$0xff]
        %v504 = vld [vmem:[#allocation9 + $0xa0] sm:$0xff]
        %v505 = vld [vmem:[#allocation9 + $0xa8] sm:$0xff]
        %v506 = vld [vmem:[#allocation9 + $0xb0] sm:$0xff]
        %v507 = vld [vmem:[#allocation9 + $0xb8] sm:$0xff]
        %v508 = vld [vmem:[#allocation9 + $0xc0] sm:$0xff]
        %v509 = vld [vmem:[#allocation9 + $0xc8] sm:$0xff]
        %v510 = vld [vmem:[#allocation9 + $0xd0] sm:$0xff]
        %v511 = vld [vmem:[#allocation9 + $0xd8] sm:$0xff]
        %v512 = vld [vmem:[#allocation9 + $0xe0] sm:$0xff]
        %v513 = vld [vmem:[#allocation9 + $0xe8] sm:$0xff]
        %v514 = vld [vmem:[#allocation9 + $0xf0] sm:$0xff]
        %v515 = vld [vmem:[#allocation9 + $0xf8] sm:$0xff]
        %v516 = vld [vmem:[%s6] sm:$0x1]
        %v517 = vld [vmem:[%s7] sm:$0x1]
        %v518 = vld [vmem:[%s363] sm:$0xff]
        %v519 = vld [vmem:[%s372] sm:$0xff]
        %v520 = vld [vmem:[%s381] sm:$0xff]
        %521 = vmatprep.subr.mxu0 0.0
        %522 = vmatpush1.msra.mxu0 %v436
        %523 = vmatprep.subr.mxu0 0.0
        %524 = vmatpush1.msra.mxu0 %v437
        %525 = vmatprep.subr.mxu0 0.0
        %526 = vmatpush1.msra.mxu0 %v438
        %527 = vmatprep.subr.mxu0 0.0
        %528 = vmatpush1.msra.mxu0 %v439
        %529 = vmatprep.subr.mxu0 0.0
        %530 = vmatpush1.msra.mxu0 %v440
        %531 = vmatprep.subr.mxu0 0.0
        %532 = vmatpush1.msra.mxu0 %v441
        %533 = vmatprep.subr.mxu0 0.0
        %534 = vmatpush1.msra.mxu0 %v442
        %535 = vmatprep.subr.mxu0 0.0
        %536 = vmatpush1.msra.mxu0 %v443
        %537 = vmatprep.subr.mxu0 0.0
        %538 = vmatpush1.msra.mxu0 %v444
        %539 = vmatprep.subr.mxu0 0.0
        %540 = vmatpush1.msra.mxu0 %v445
        %541 = vmatprep.subr.mxu0 0.0
        %542 = vmatpush1.msra.mxu0 %v446
        %543 = vmatprep.subr.mxu0 0.0
        %544 = vmatpush1.msra.mxu0 %v447
        %545 = vmatprep.subr.mxu0 0.0
        %546 = vmatpush1.msra.mxu0 %v448
        %547 = vmatprep.subr.mxu0 0.0
        %548 = vmatpush1.msra.mxu0 %v449
        %549 = vmatprep.subr.mxu0 0.0
        %550 = vmatpush1.msra.mxu0 %v450
        %551 = vmatprep.subr.mxu0 0.0
        %552 = vmatpush1.msra.mxu0 %v451
        %553 = vmatprep.subr.mxu0 0.0
        %554 = vmatpush1.msra.mxu0 0.0
        %555 = vmatprep.subr.mxu0 0.0
        %556 = vmatpush1.msra.mxu0 0.0
        %557 = vmatprep.subr.mxu0 0.0
        %558 = vmatpush1.msra.mxu0 0.0
        %559 = vmatprep.subr.mxu0 0.0
        %560 = vmatpush1.msra.mxu0 0.0
        %561 = vmatprep.subr.mxu0 0.0
        %562 = vmatpush1.msra.mxu0 0.0
        %563 = vmatprep.subr.mxu0 0.0
        %564 = vmatpush1.msra.mxu0 0.0
        %565 = vmatprep.subr.mxu0 0.0
        %566 = vmatpush1.msra.mxu0 0.0
        %567 = vmatprep.subr.mxu0 0.0
        %568 = vmatpush1.msra.mxu0 0.0
        %569 = vmatprep.subr.mxu0 0.0
        %570 = vmatpush1.msra.mxu0 0.0
        %571 = vmatprep.subr.mxu0 0.0
        %572 = vmatpush1.msra.mxu0 0.0
        %573 = vmatprep.subr.mxu0 0.0
        %574 = vmatpush1.msra.mxu0 0.0
        %575 = vmatprep.subr.mxu0 0.0
        %576 = vmatpush1.msra.mxu0 0.0
        %577 = vmatprep.subr.mxu0 0.0
        %578 = vmatpush1.msra.mxu0 0.0
        %579 = vmatprep.subr.mxu0 0.0
        %580 = vmatpush1.msra.mxu0 0.0
        %581 = vmatprep.subr.mxu0 0.0
        %582 = vmatpush1.msra.mxu0 0.0
        %583 = vmatprep.subr.mxu0 0.0
        %584 = vmatpush1.msra.mxu0 0.0
        %585 = vmatprep.mubr.f32.mxu0 0.0
        %586 = vmatmul.mubr.f32.gmra.mrb[0].mxu0 %v518
        %v587 = vpop.f32.mrb[0].mxu0
        %v588 = vadd.f32 0.0, %v587
        %v589 = vpop.f32.mrb[0].mxu0
        %590 = vdwg.mxu0
        %v591 = vmul.f32 %v588, 0.03125
        %v592 = vsub.f32 %v518, %v591
        %v593 = vmul.f32 %v592, %v592
        %594 = vmatprep.subr.mxu0 0.0
        %595 = vmatpush1.msra.mxu0 %v436
        %596 = vmatprep.subr.mxu0 0.0
        %597 = vmatpush1.msra.mxu0 %v437
        %598 = vmatprep.subr.mxu0 0.0
        %599 = vmatpush1.msra.mxu0 %v438
        %600 = vmatprep.subr.mxu0 0.0
        %601 = vmatpush1.msra.mxu0 %v439
        %602 = vmatprep.subr.mxu0 0.0
        %603 = vmatpush1.msra.mxu0 %v440
        %604 = vmatprep.subr.mxu0 0.0
        %605 = vmatpush1.msra.mxu0 %v441
        %606 = vmatprep.subr.mxu0 0.0
        %607 = vmatpush1.msra.mxu0 %v442
        %608 = vmatprep.subr.mxu0 0.0
        %609 = vmatpush1.msra.mxu0 %v443
        %610 = vmatprep.subr.mxu0 0.0
        %611 = vmatpush1.msra.mxu0 %v444
        %612 = vmatprep.subr.mxu0 0.0
        %613 = vmatpush1.msra.mxu0 %v445
        %614 = vmatprep.subr.mxu0 0.0
        %615 = vmatpush1.msra.mxu0 %v446
        %616 = vmatprep.subr.mxu0 0.0
        %617 = vmatpush1.msra.mxu0 %v447
        %618 = vmatprep.subr.mxu0 0.0
        %619 = vmatpush1.msra.mxu0 %v448
        %620 = vmatprep.subr.mxu0 0.0
        %621 = vmatpush1.msra.mxu0 %v449
        %622 = vmatprep.subr.mxu0 0.0
        %623 = vmatpush1.msra.mxu0 %v450
        %624 = vmatprep.subr.mxu0 0.0
        %625 = vmatpush1.msra.mxu0 %v451
        %626 = vmatprep.subr.mxu0 0.0
        %627 = vmatpush1.msra.mxu0 0.0
        %628 = vmatprep.subr.mxu0 0.0
        %629 = vmatpush1.msra.mxu0 0.0
        %630 = vmatprep.subr.mxu0 0.0
        %631 = vmatpush1.msra.mxu0 0.0
        %632 = vmatprep.subr.mxu0 0.0
        %633 = vmatpush1.msra.mxu0 0.0
        %634 = vmatprep.subr.mxu0 0.0
        %635 = vmatpush1.msra.mxu0 0.0
        %636 = vmatprep.subr.mxu0 0.0
        %637 = vmatpush1.msra.mxu0 0.0
        %638 = vmatprep.subr.mxu0 0.0
        %639 = vmatpush1.msra.mxu0 0.0
        %640 = vmatprep.subr.mxu0 0.0
        %641 = vmatpush1.msra.mxu0 0.0
        %642 = vmatprep.subr.mxu0 0.0
        %643 = vmatpush1.msra.mxu0 0.0
        %644 = vmatprep.subr.mxu0 0.0
        %645 = vmatpush1.msra.mxu0 0.0
        %646 = vmatprep.subr.mxu0 0.0
        %647 = vmatpush1.msra.mxu0 0.0
        %648 = vmatprep.subr.mxu0 0.0
        %649 = vmatpush1.msra.mxu0 0.0
        %650 = vmatprep.subr.mxu0 0.0
        %651 = vmatpush1.msra.mxu0 0.0
        %652 = vmatprep.subr.mxu0 0.0
        %653 = vmatpush1.msra.mxu0 0.0
        %654 = vmatprep.subr.mxu0 0.0
        %655 = vmatpush1.msra.mxu0 0.0
        %656 = vmatprep.subr.mxu0 0.0
        %657 = vmatpush1.msra.mxu0 0.0
        %658 = vmatprep.mubr.f32.mxu0 0.0
        %659 = vmatmul.mubr.f32.gmra.mrb[0].mxu0 %v593
        %v660 = vpop.f32.mrb[0].mxu0
        %v661 = vadd.f32 0.0, %v660
        %v662 = vpop.f32.mrb[0].mxu0
        %663 = vdwg.mxu0
        %v664 = vmul.f32 %v661, 0.03125
        %v665 = vadd.f32 %v664, 1e-05
        %v666 = vrsqrt.pop %v665
        %v667 = vmul.f32 %v592, %v666
        %v669 = vlaneseq
        %v670 = vshrl.u32 %v669, 7
        %v671 = vsub.s32 0, %v670
        %v672 = vrot.slane %v516, %v671
        %v674 = vmul.f32 %v667, %v672
        %v676 = vlaneseq
        %v677 = vshrl.u32 %v676, 7
        %v678 = vsub.s32 0, %v677
        %v679 = vrot.slane %v517, %v678
        %v681 = vadd.f32 %v674, %v679
        %v682 = vmul.f32 %v681, %v681
        %683 = vmatprep.subr.mxu0 0.0
        %684 = vmatpush1.msra.mxu0 %v436
        %685 = vmatprep.subr.mxu0 0.0
        %686 = vmatpush1.msra.mxu0 %v437
        %687 = vmatprep.subr.mxu0 0.0
        %688 = vmatpush1.msra.mxu0 %v438
        %689 = vmatprep.subr.mxu0 0.0
        %690 = vmatpush1.msra.mxu0 %v439
        %691 = vmatprep.subr.mxu0 0.0
        %692 = vmatpush1.msra.mxu0 %v440
        %693 = vmatprep.subr.mxu0 0.0
        %694 = vmatpush1.msra.mxu0 %v441
        %695 = vmatprep.subr.mxu0 0.0
        %696 = vmatpush1.msra.mxu0 %v442
        %697 = vmatprep.subr.mxu0 0.0
        %698 = vmatpush1.msra.mxu0 %v443
        %699 = vmatprep.subr.mxu0 0.0
        %700 = vmatpush1.msra.mxu0 %v444
        %701 = vmatprep.subr.mxu0 0.0
        %702 = vmatpush1.msra.mxu0 %v445
        %703 = vmatprep.subr.mxu0 0.0
        %704 = vmatpush1.msra.mxu0 %v446
        %705 = vmatprep.subr.mxu0 0.0
        %706 = vmatpush1.msra.mxu0 %v447
        %707 = vmatprep.subr.mxu0 0.0
        %708 = vmatpush1.msra.mxu0 %v448
        %709 = vmatprep.subr.mxu0 0.0
        %710 = vmatpush1.msra.mxu0 %v449
        %711 = vmatprep.subr.mxu0 0.0
        %712 = vmatpush1.msra.mxu0 %v450
        %713 = vmatprep.subr.mxu0 0.0
        %714 = vmatpush1.msra.mxu0 %v451
        %715 = vmatprep.subr.mxu0 0.0
        %716 = vmatpush1.msra.mxu0 0.0
        %717 = vmatprep.subr.mxu0 0.0
        %718 = vmatpush1.msra.mxu0 0.0
        %719 = vmatprep.subr.mxu0 0.0
        %720 = vmatpush1.msra.mxu0 0.0
        %721 = vmatprep.subr.mxu0 0.0
        %722 = vmatpush1.msra.mxu0 0.0
        %723 = vmatprep.subr.mxu0 0.0
        %724 = vmatpush1.msra.mxu0 0.0
        %725 = vmatprep.subr.mxu0 0.0
        %726 = vmatpush1.msra.mxu0 0.0
        %727 = vmatprep.subr.mxu0 0.0
        %728 = vmatpush1.msra.mxu0 0.0
        %729 = vmatprep.subr.mxu0 0.0
        %730 = vmatpush1.msra.mxu0 0.0
        %731 = vmatprep.subr.mxu0 0.0
        %732 = vmatpush1.msra.mxu0 0.0
        %733 = vmatprep.subr.mxu0 0.0
        %734 = vmatpush1.msra.mxu0 0.0
        %735 = vmatprep.subr.mxu0 0.0
        %736 = vmatpush1.msra.mxu0 0.0
        %737 = vmatprep.subr.mxu0 0.0
        %738 = vmatpush1.msra.mxu0 0.0
        %739 = vmatprep.subr.mxu0 0.0
        %740 = vmatpush1.msra.mxu0 0.0
        %741 = vmatprep.subr.mxu0 0.0
        %742 = vmatpush1.msra.mxu0 0.0
        %743 = vmatprep.subr.mxu0 0.0
        %744 = vmatpush1.msra.mxu0 0.0
        %745 = vmatprep.subr.mxu0 0.0
        %746 = vmatpush1.msra.mxu0 0.0
        %747 = vmatprep.mubr.f32.mxu0 0.0
        %748 = vmatmul.mubr.f32.gmra.mrb[0].mxu0 %v682
        %v749 = vpop.f32.mrb[0].mxu0
        %v750 = vadd.f32 0.0, %v749
        %v751 = vpop.f32.mrb[0].mxu0
        %752 = vdwg.mxu0
        %v753 = vrsqrt.pop %v750
        %v754 = vmul.f32 %v750, %v753
        %vm755 = vcmp.eq.f32.partialorder %v750, inf
        %v756 = vsel %vm755, %v750, %v754
        %vm757 = vcmp.eq.f32.partialorder %v750, 0.0
        %v758 = vand.u32 %v750, 2147483648
        %v759 = vsel %vm757, %v758, %v756
        %v760 = vmax.f32 %v759, 1e-12
        %v761 = vrcp.pop %v760
        %v762 = vmul.f32 %v681, %v761
        %763 = vmatprep.subr.mxu0 0.0
        %764 = vmatpush1.msra.mxu0 %v436
        %765 = vmatprep.subr.mxu0 0.0
        %766 = vmatpush1.msra.mxu0 %v437
        %767 = vmatprep.subr.mxu0 0.0
        %768 = vmatpush1.msra.mxu0 %v438
        %769 = vmatprep.subr.mxu0 0.0
        %770 = vmatpush1.msra.mxu0 %v439
        %771 = vmatprep.subr.mxu0 0.0
        %772 = vmatpush1.msra.mxu0 %v440
        %773 = vmatprep.subr.mxu0 0.0
        %774 = vmatpush1.msra.mxu0 %v441
        %775 = vmatprep.subr.mxu0 0.0
        %776 = vmatpush1.msra.mxu0 %v442
        %777 = vmatprep.subr.mxu0 0.0
        %778 = vmatpush1.msra.mxu0 %v443
        %779 = vmatprep.subr.mxu0 0.0
        %780 = vmatpush1.msra.mxu0 %v444
        %781 = vmatprep.subr.mxu0 0.0
        %782 = vmatpush1.msra.mxu0 %v445
        %783 = vmatprep.subr.mxu0 0.0
        %784 = vmatpush1.msra.mxu0 %v446
        %785 = vmatprep.subr.mxu0 0.0
        %786 = vmatpush1.msra.mxu0 %v447
        %787 = vmatprep.subr.mxu0 0.0
        %788 = vmatpush1.msra.mxu0 %v448
        %789 = vmatprep.subr.mxu0 0.0
        %790 = vmatpush1.msra.mxu0 %v449
        %791 = vmatprep.subr.mxu0 0.0
        %792 = vmatpush1.msra.mxu0 %v450
        %793 = vmatprep.subr.mxu0 0.0
        %794 = vmatpush1.msra.mxu0 %v451
        %795 = vmatprep.subr.mxu0 0.0
        %796 = vmatpush1.msra.mxu0 0.0
        %797 = vmatprep.subr.mxu0 0.0
        %798 = vmatpush1.msra.mxu0 0.0
        %799 = vmatprep.subr.mxu0 0.0
        %800 = vmatpush1.msra.mxu0 0.0
        %801 = vmatprep.subr.mxu0 0.0
        %802 = vmatpush1.msra.mxu0 0.0
        %803 = vmatprep.subr.mxu0 0.0
        %804 = vmatpush1.msra.mxu0 0.0
        %805 = vmatprep.subr.mxu0 0.0
        %806 = vmatpush1.msra.mxu0 0.0
        %807 = vmatprep.subr.mxu0 0.0
        %808 = vmatpush1.msra.mxu0 0.0
        %809 = vmatprep.subr.mxu0 0.0
        %810 = vmatpush1.msra.mxu0 0.0
        %811 = vmatprep.subr.mxu0 0.0
        %812 = vmatpush1.msra.mxu0 0.0
        %813 = vmatprep.subr.mxu0 0.0
        %814 = vmatpush1.msra.mxu0 0.0
        %815 = vmatprep.subr.mxu0 0.0
        %816 = vmatpush1.msra.mxu0 0.0
        %817 = vmatprep.subr.mxu0 0.0
        %818 = vmatpush1.msra.mxu0 0.0
        %819 = vmatprep.subr.mxu0 0.0
        %820 = vmatpush1.msra.mxu0 0.0
        %821 = vmatprep.subr.mxu0 0.0
        %822 = vmatpush1.msra.mxu0 0.0
        %823 = vmatprep.subr.mxu0 0.0
        %824 = vmatpush1.msra.mxu0 0.0
        %825 = vmatprep.subr.mxu0 0.0
        %826 = vmatpush1.msra.mxu0 0.0
        %827 = vmatprep.mubr.f32.mxu0 0.0
        %828 = vmatmul.mubr.f32.gmra.mrb[0].mxu0 %v519
        %v829 = vpop.f32.mrb[0].mxu0
        %v830 = vadd.f32 0.0, %v829
        %v831 = vpop.f32.mrb[0].mxu0
        %832 = vdwg.mxu0
        %v833 = vmul.f32 %v830, 0.03125
        %v834 = vsub.f32 %v519, %v833
        %v835 = vmul.f32 %v834, %v834
        %836 = vmatprep.subr.mxu0 0.0
        %837 = vmatpush1.msra.mxu0 %v436
        %838 = vmatprep.subr.mxu0 0.0
        %839 = vmatpush1.msra.mxu0 %v437
        %840 = vmatprep.subr.mxu0 0.0
        %841 = vmatpush1.msra.mxu0 %v438
        %842 = vmatprep.subr.mxu0 0.0
        %843 = vmatpush1.msra.mxu0 %v439
        %844 = vmatprep.subr.mxu0 0.0
        %845 = vmatpush1.msra.mxu0 %v440
        %846 = vmatprep.subr.mxu0 0.0
        %847 = vmatpush1.msra.mxu0 %v441
        %848 = vmatprep.subr.mxu0 0.0
        %849 = vmatpush1.msra.mxu0 %v442
        %850 = vmatprep.subr.mxu0 0.0
        %851 = vmatpush1.msra.mxu0 %v443
        %852 = vmatprep.subr.mxu0 0.0
        %853 = vmatpush1.msra.mxu0 %v444
        %854 = vmatprep.subr.mxu0 0.0
        %855 = vmatpush1.msra.mxu0 %v445
        %856 = vmatprep.subr.mxu0 0.0
        %857 = vmatpush1.msra.mxu0 %v446
        %858 = vmatprep.subr.mxu0 0.0
        %859 = vmatpush1.msra.mxu0 %v447
        %860 = vmatprep.subr.mxu0 0.0
        %861 = vmatpush1.msra.mxu0 %v448
        %862 = vmatprep.subr.mxu0 0.0
        %863 = vmatpush1.msra.mxu0 %v449
        %864 = vmatprep.subr.mxu0 0.0
        %865 = vmatpush1.msra.mxu0 %v450
        %866 = vmatprep.subr.mxu0 0.0
        %867 = vmatpush1.msra.mxu0 %v451
        %868 = vmatprep.subr.mxu0 0.0
        %869 = vmatpush1.msra.mxu0 0.0
        %870 = vmatprep.subr.mxu0 0.0
        %871 = vmatpush1.msra.mxu0 0.0
        %872 = vmatprep.subr.mxu0 0.0
        %873 = vmatpush1.msra.mxu0 0.0
        %874 = vmatprep.subr.mxu0 0.0
        %875 = vmatpush1.msra.mxu0 0.0
        %876 = vmatprep.subr.mxu0 0.0
        %877 = vmatpush1.msra.mxu0 0.0
        %878 = vmatprep.subr.mxu0 0.0
        %879 = vmatpush1.msra.mxu0 0.0
        %880 = vmatprep.subr.mxu0 0.0
        %881 = vmatpush1.msra.mxu0 0.0
        %882 = vmatprep.subr.mxu0 0.0
        %883 = vmatpush1.msra.mxu0 0.0
        %884 = vmatprep.subr.mxu0 0.0
        %885 = vmatpush1.msra.mxu0 0.0
        %886 = vmatprep.subr.mxu0 0.0
        %887 = vmatpush1.msra.mxu0 0.0
        %888 = vmatprep.subr.mxu0 0.0
        %889 = vmatpush1.msra.mxu0 0.0
        %890 = vmatprep.subr.mxu0 0.0
        %891 = vmatpush1.msra.mxu0 0.0
        %892 = vmatprep.subr.mxu0 0.0
        %893 = vmatpush1.msra.mxu0 0.0
        %894 = vmatprep.subr.mxu0 0.0
        %895 = vmatpush1.msra.mxu0 0.0
        %896 = vmatprep.subr.mxu0 0.0
        %897 = vmatpush1.msra.mxu0 0.0
        %898 = vmatprep.subr.mxu0 0.0
        %899 = vmatpush1.msra.mxu0 0.0
        %900 = vmatprep.mubr.f32.mxu0 0.0
        %901 = vmatmul.mubr.f32.gmra.mrb[0].mxu0 %v835
        %v902 = vpop.f32.mrb[0].mxu0
        %v903 = vadd.f32 0.0, %v902
        %v904 = vpop.f32.mrb[0].mxu0
        %905 = vdwg.mxu0
        %v906 = vmul.f32 %v903, 0.03125
        %v907 = vadd.f32 %v906, 1e-05
        %v908 = vrsqrt.pop %v907
        %v909 = vmul.f32 %v834, %v908
        %v910 = vmul.f32 %v909, %v672
        %v911 = vadd.f32 %v910, %v679
        %v912 = vmul.f32 %v911, %v911
        %913 = vmatprep.subr.mxu0 0.0
        %914 = vmatpush1.msra.mxu0 %v436
        %915 = vmatprep.subr.mxu0 0.0
        %916 = vmatpush1.msra.mxu0 %v437
        %917 = vmatprep.subr.mxu0 0.0
        %918 = vmatpush1.msra.mxu0 %v438
        %919 = vmatprep.subr.mxu0 0.0
        %920 = vmatpush1.msra.mxu0 %v439
        %921 = vmatprep.subr.mxu0 0.0
        %922 = vmatpush1.msra.mxu0 %v440
        %923 = vmatprep.subr.mxu0 0.0
        %924 = vmatpush1.msra.mxu0 %v441
        %925 = vmatprep.subr.mxu0 0.0
        %926 = vmatpush1.msra.mxu0 %v442
        %927 = vmatprep.subr.mxu0 0.0
        %928 = vmatpush1.msra.mxu0 %v443
        %929 = vmatprep.subr.mxu0 0.0
        %930 = vmatpush1.msra.mxu0 %v444
        %931 = vmatprep.subr.mxu0 0.0
        %932 = vmatpush1.msra.mxu0 %v445
        %933 = vmatprep.subr.mxu0 0.0
        %934 = vmatpush1.msra.mxu0 %v446
        %935 = vmatprep.subr.mxu0 0.0
        %936 = vmatpush1.msra.mxu0 %v447
        %937 = vmatprep.subr.mxu0 0.0
        %938 = vmatpush1.msra.mxu0 %v448
        %939 = vmatprep.subr.mxu0 0.0
        %940 = vmatpush1.msra.mxu0 %v449
        %941 = vmatprep.subr.mxu0 0.0
        %942 = vmatpush1.msra.mxu0 %v450
        %943 = vmatprep.subr.mxu0 0.0
        %944 = vmatpush1.msra.mxu0 %v451
        %945 = vmatprep.subr.mxu0 0.0
        %946 = vmatpush1.msra.mxu0 0.0
        %947 = vmatprep.subr.mxu0 0.0
        %948 = vmatpush1.msra.mxu0 0.0
        %949 = vmatprep.subr.mxu0 0.0
        %950 = vmatpush1.msra.mxu0 0.0
        %951 = vmatprep.subr.mxu0 0.0
        %952 = vmatpush1.msra.mxu0 0.0
        %953 = vmatprep.subr.mxu0 0.0
        %954 = vmatpush1.msra.mxu0 0.0
        %955 = vmatprep.subr.mxu0 0.0
        %956 = vmatpush1.msra.mxu0 0.0
        %957 = vmatprep.subr.mxu0 0.0
        %958 = vmatpush1.msra.mxu0 0.0
        %959 = vmatprep.subr.mxu0 0.0
        %960 = vmatpush1.msra.mxu0 0.0
        %961 = vmatprep.subr.mxu0 0.0
        %962 = vmatpush1.msra.mxu0 0.0
        %963 = vmatprep.subr.mxu0 0.0
        %964 = vmatpush1.msra.mxu0 0.0
        %965 = vmatprep.subr.mxu0 0.0
        %966 = vmatpush1.msra.mxu0 0.0
        %967 = vmatprep.subr.mxu0 0.0
        %968 = vmatpush1.msra.mxu0 0.0
        %969 = vmatprep.subr.mxu0 0.0
        %970 = vmatpush1.msra.mxu0 0.0
        %971 = vmatprep.subr.mxu0 0.0
        %972 = vmatpush1.msra.mxu0 0.0
        %973 = vmatprep.subr.mxu0 0.0
        %974 = vmatpush1.msra.mxu0 0.0
        %975 = vmatprep.subr.mxu0 0.0
        %976 = vmatpush1.msra.mxu0 0.0
        %977 = vmatprep.mubr.f32.mxu0 0.0
        %978 = vmatmul.mubr.f32.gmra.mrb[0].mxu0 %v912
        %v979 = vpop.f32.mrb[0].mxu0
        %v980 = vadd.f32 0.0, %v979
        %v981 = vpop.f32.mrb[0].mxu0
        %982 = vdwg.mxu0
        %v983 = vrsqrt.pop %v980
        %v984 = vmul.f32 %v980, %v983
        %vm985 = vcmp.eq.f32.partialorder %v980, inf
        %v986 = vsel %vm985, %v980, %v984
        %vm987 = vcmp.eq.f32.partialorder %v980, 0.0
        %v988 = vand.u32 %v980, 2147483648
        %v989 = vsel %vm987, %v988, %v986
        %v990 = vmax.f32 %v989, 1e-12
        %v991 = vrcp.pop %v990
        %v992 = vmul.f32 %v911, %v991
        %993 = vmatprep.subr.mxu0 0.0
        %994 = vmatpush1.msra.mxu0 %v436
        %995 = vmatprep.subr.mxu0 0.0
        %996 = vmatpush1.msra.mxu0 %v437
        %997 = vmatprep.subr.mxu0 0.0
        %998 = vmatpush1.msra.mxu0 %v438
        %999 = vmatprep.subr.mxu0 0.0
        %1000 = vmatpush1.msra.mxu0 %v439
        %1001 = vmatprep.subr.mxu0 0.0
        %1002 = vmatpush1.msra.mxu0 %v440
        %1003 = vmatprep.subr.mxu0 0.0
        %1004 = vmatpush1.msra.mxu0 %v441
        %1005 = vmatprep.subr.mxu0 0.0
        %1006 = vmatpush1.msra.mxu0 %v442
        %1007 = vmatprep.subr.mxu0 0.0
        %1008 = vmatpush1.msra.mxu0 %v443
        %1009 = vmatprep.subr.mxu0 0.0
        %1010 = vmatpush1.msra.mxu0 %v444
        %1011 = vmatprep.subr.mxu0 0.0
        %1012 = vmatpush1.msra.mxu0 %v445
        %1013 = vmatprep.subr.mxu0 0.0
        %1014 = vmatpush1.msra.mxu0 %v446
        %1015 = vmatprep.subr.mxu0 0.0
        %1016 = vmatpush1.msra.mxu0 %v447
        %1017 = vmatprep.subr.mxu0 0.0
        %1018 = vmatpush1.msra.mxu0 %v448
        %1019 = vmatprep.subr.mxu0 0.0
        %1020 = vmatpush1.msra.mxu0 %v449
        %1021 = vmatprep.subr.mxu0 0.0
        %1022 = vmatpush1.msra.mxu0 %v450
        %1023 = vmatprep.subr.mxu0 0.0
        %1024 = vmatpush1.msra.mxu0 %v451
        %1025 = vmatprep.subr.mxu0 0.0
        %1026 = vmatpush1.msra.mxu0 0.0
        %1027 = vmatprep.subr.mxu0 0.0
        %1028 = vmatpush1.msra.mxu0 0.0
        %1029 = vmatprep.subr.mxu0 0.0
        %1030 = vmatpush1.msra.mxu0 0.0
        %1031 = vmatprep.subr.mxu0 0.0
        %1032 = vmatpush1.msra.mxu0 0.0
        %1033 = vmatprep.subr.mxu0 0.0
        %1034 = vmatpush1.msra.mxu0 0.0
        %1035 = vmatprep.subr.mxu0 0.0
        %1036 = vmatpush1.msra.mxu0 0.0
        %1037 = vmatprep.subr.mxu0 0.0
        %1038 = vmatpush1.msra.mxu0 0.0
        %1039 = vmatprep.subr.mxu0 0.0
        %1040 = vmatpush1.msra.mxu0 0.0
        %1041 = vmatprep.subr.mxu0 0.0
        %1042 = vmatpush1.msra.mxu0 0.0
        %1043 = vmatprep.subr.mxu0 0.0
        %1044 = vmatpush1.msra.mxu0 0.0
        %1045 = vmatprep.subr.mxu0 0.0
        %1046 = vmatpush1.msra.mxu0 0.0
        %1047 = vmatprep.subr.mxu0 0.0
        %1048 = vmatpush1.msra.mxu0 0.0
        %1049 = vmatprep.subr.mxu0 0.0
        %1050 = vmatpush1.msra.mxu0 0.0
        %1051 = vmatprep.subr.mxu0 0.0
        %1052 = vmatpush1.msra.mxu0 0.0
        %1053 = vmatprep.subr.mxu0 0.0
        %1054 = vmatpush1.msra.mxu0 0.0
        %1055 = vmatprep.subr.mxu0 0.0
        %1056 = vmatpush1.msra.mxu0 0.0
        %1057 = vmatprep.mubr.f32.mxu0 0.0
        %1058 = vmatmul.mubr.f32.gmra.mrb[0].mxu0 %v520
        %v1059 = vpop.f32.mrb[0].mxu0
        %v1060 = vadd.f32 0.0, %v1059
        %v1061 = vpop.f32.mrb[0].mxu0
        %1062 = vdwg.mxu0
        %v1063 = vmul.f32 %v1060, 0.03125
        %v1064 = vsub.f32 %v520, %v1063
        %v1065 = vmul.f32 %v1064, %v1064
        %1066 = vmatprep.subr.mxu0 0.0
        %1067 = vmatpush1.msra.mxu0 %v436
        %1068 = vmatprep.subr.mxu0 0.0
        %1069 = vmatpush1.msra.mxu0 %v437
        %1070 = vmatprep.subr.mxu0 0.0
        %1071 = vmatpush1.msra.mxu0 %v438
        %1072 = vmatprep.subr.mxu0 0.0
        %1073 = vmatpush1.msra.mxu0 %v439
        %1074 = vmatprep.subr.mxu0 0.0
        %1075 = vmatpush1.msra.mxu0 %v440
        %1076 = vmatprep.subr.mxu0 0.0
        %1077 = vmatpush1.msra.mxu0 %v441
        %1078 = vmatprep.subr.mxu0 0.0
        %1079 = vmatpush1.msra.mxu0 %v442
        %1080 = vmatprep.subr.mxu0 0.0
        %1081 = vmatpush1.msra.mxu0 %v443
        %1082 = vmatprep.subr.mxu0 0.0
        %1083 = vmatpush1.msra.mxu0 %v444
        %1084 = vmatprep.subr.mxu0 0.0
        %1085 = vmatpush1.msra.mxu0 %v445
        %1086 = vmatprep.subr.mxu0 0.0
        %1087 = vmatpush1.msra.mxu0 %v446
        %1088 = vmatprep.subr.mxu0 0.0
        %1089 = vmatpush1.msra.mxu0 %v447
        %1090 = vmatprep.subr.mxu0 0.0
        %1091 = vmatpush1.msra.mxu0 %v448
        %1092 = vmatprep.subr.mxu0 0.0
        %1093 = vmatpush1.msra.mxu0 %v449
        %1094 = vmatprep.subr.mxu0 0.0
        %1095 = vmatpush1.msra.mxu0 %v450
        %1096 = vmatprep.subr.mxu0 0.0
        %1097 = vmatpush1.msra.mxu0 %v451
        %1098 = vmatprep.subr.mxu0 0.0
        %1099 = vmatpush1.msra.mxu0 0.0
        %1100 = vmatprep.subr.mxu0 0.0
        %1101 = vmatpush1.msra.mxu0 0.0
        %1102 = vmatprep.subr.mxu0 0.0
        %1103 = vmatpush1.msra.mxu0 0.0
        %1104 = vmatprep.subr.mxu0 0.0
        %1105 = vmatpush1.msra.mxu0 0.0
        %1106 = vmatprep.subr.mxu0 0.0
        %1107 = vmatpush1.msra.mxu0 0.0
        %1108 = vmatprep.subr.mxu0 0.0
        %1109 = vmatpush1.msra.mxu0 0.0
        %1110 = vmatprep.subr.mxu0 0.0
        %1111 = vmatpush1.msra.mxu0 0.0
        %1112 = vmatprep.subr.mxu0 0.0
        %1113 = vmatpush1.msra.mxu0 0.0
        %1114 = vmatprep.subr.mxu0 0.0
        %1115 = vmatpush1.msra.mxu0 0.0
        %1116 = vmatprep.subr.mxu0 0.0
        %1117 = vmatpush1.msra.mxu0 0.0
        %1118 = vmatprep.subr.mxu0 0.0
        %1119 = vmatpush1.msra.mxu0 0.0
        %1120 = vmatprep.subr.mxu0 0.0
        %1121 = vmatpush1.msra.mxu0 0.0
        %1122 = vmatprep.subr.mxu0 0.0
        %1123 = vmatpush1.msra.mxu0 0.0
        %1124 = vmatprep.subr.mxu0 0.0
        %1125 = vmatpush1.msra.mxu0 0.0
        %1126 = vmatprep.subr.mxu0 0.0
        %1127 = vmatpush1.msra.mxu0 0.0
        %1128 = vmatprep.subr.mxu0 0.0
        %1129 = vmatpush1.msra.mxu0 0.0
        %1130 = vmatprep.mubr.f32.mxu0 0.0
        %1131 = vmatmul.mubr.f32.gmra.mrb[0].mxu0 %v1065
        %v1132 = vpop.f32.mrb[0].mxu0
        %v1133 = vadd.f32 0.0, %v1132
        %v1134 = vpop.f32.mrb[0].mxu0
        %1135 = vdwg.mxu0
        %v1136 = vmul.f32 %v1133, 0.03125
        %v1137 = vadd.f32 %v1136, 1e-05
        %v1138 = vrsqrt.pop %v1137
        %v1139 = vmul.f32 %v1064, %v1138
        %v1140 = vmul.f32 %v1139, %v672
        %v1141 = vadd.f32 %v1140, %v679
        %1142 = vmatprep.subr.mxu0 %v485
        %1143 = vmatpush1.msra.mxu0 %v484
        %1144 = vmatprep.subr.mxu0 %v487
        %1145 = vmatpush1.msra.mxu0 %v486
        %1146 = vmatprep.subr.mxu0 %v489
        %1147 = vmatpush1.msra.mxu0 %v488
        %1148 = vmatprep.subr.mxu0 %v491
        %1149 = vmatpush1.msra.mxu0 %v490
        %1150 = vmatprep.subr.mxu0 %v493
        %1151 = vmatpush1.msra.mxu0 %v492
        %1152 = vmatprep.subr.mxu0 %v495
        %1153 = vmatpush1.msra.mxu0 %v494
        %1154 = vmatprep.subr.mxu0 %v497
        %1155 = vmatpush1.msra.mxu0 %v496
        %1156 = vmatprep.subr.mxu0 %v499
        %1157 = vmatpush1.msra.mxu0 %v498
        %1158 = vmatprep.subr.mxu0 %v501
        %1159 = vmatpush1.msra.mxu0 %v500
        %1160 = vmatprep.subr.mxu0 %v503
        %1161 = vmatpush1.msra.mxu0 %v502
        %1162 = vmatprep.subr.mxu0 %v505
        %1163 = vmatpush1.msra.mxu0 %v504
        %1164 = vmatprep.subr.mxu0 %v507
        %1165 = vmatpush1.msra.mxu0 %v506
        %1166 = vmatprep.subr.mxu0 %v509
        %1167 = vmatpush1.msra.mxu0 %v508
        %1168 = vmatprep.subr.mxu0 %v511
        %1169 = vmatpush1.msra.mxu0 %v510
        %1170 = vmatprep.subr.mxu0 %v513
        %1171 = vmatpush1.msra.mxu0 %v512
        %1172 = vmatprep.subr.mxu0 %v515
        %1173 = vmatpush1.msra.mxu0 %v514
        %1174 = vmatprep.subr.mxu0 0.0
        %1175 = vmatpush1.msra.mxu0 0.0
        %1176 = vmatprep.subr.mxu0 0.0
        %1177 = vmatpush1.msra.mxu0 0.0
        %1178 = vmatprep.subr.mxu0 0.0
        %1179 = vmatpush1.msra.mxu0 0.0
        %1180 = vmatprep.subr.mxu0 0.0
        %1181 = vmatpush1.msra.mxu0 0.0
        %1182 = vmatprep.subr.mxu0 0.0
        %1183 = vmatpush1.msra.mxu0 0.0
        %1184 = vmatprep.subr.mxu0 0.0
        %1185 = vmatpush1.msra.mxu0 0.0
        %1186 = vmatprep.subr.mxu0 0.0
        %1187 = vmatpush1.msra.mxu0 0.0
        %1188 = vmatprep.subr.mxu0 0.0
        %1189 = vmatpush1.msra.mxu0 0.0
        %1190 = vmatprep.subr.mxu0 0.0
        %1191 = vmatpush1.msra.mxu0 0.0
        %1192 = vmatprep.subr.mxu0 0.0
        %1193 = vmatpush1.msra.mxu0 0.0
        %1194 = vmatprep.subr.mxu0 0.0
        %1195 = vmatpush1.msra.mxu0 0.0
        %1196 = vmatprep.subr.mxu0 0.0
        %1197 = vmatpush1.msra.mxu0 0.0
        %1198 = vmatprep.subr.mxu0 0.0
        %1199 = vmatpush1.msra.mxu0 0.0
        %1200 = vmatprep.subr.mxu0 0.0
        %1201 = vmatpush1.msra.mxu0 0.0
        %1202 = vmatprep.subr.mxu0 0.0
        %1203 = vmatpush1.msra.mxu0 0.0
        %1204 = vmatprep.subr.mxu0 0.0
        %1205 = vmatpush1.msra.mxu0 0.0
        %1206 = vmatprep.mubr.f32.mxu0 0.0
        %1207 = vmatmul.mubr.f32.gmra.mrb[0].mxu0 %v762
        %v1208 = vpop.f32.mrb[0].mxu0
        %v1209 = vadd.f32 0.0, %v1208
        %v1210 = vpop.f32.mrb[0].mxu0
        %v1211 = vadd.f32 0.0, %v1210
        %1212 = vdwg.mxu0
        %v1213 = vmax.f32 %v1209, -15.0
        %v1214 = vmax.f32 %v1211, -15.0
        %v1215 = vmin.f32 %v1213, 15.0
        %v1216 = vmin.f32 %v1214, 15.0
        %v1217 = vadd.f32 %v1215, -2.3025851
        %v1218 = vadd.f32 %v1216, -2.3025851
        %v1219 = vmul.f32 %v1217, 1.442695
        %v1220 = vpow.pop %v1219
        %v1221 = vmul.f32 %v1218, 1.442695
        %v1222 = vpow.pop %v1221
        %1223 = vmatprep.subr.mxu0 %v485
        %1224 = vmatpush1.msra.mxu0 %v484
        %1225 = vmatprep.subr.mxu0 %v487
        %1226 = vmatpush1.msra.mxu0 %v486
        %1227 = vmatprep.subr.mxu0 %v489
        %1228 = vmatpush1.msra.mxu0 %v488
        %1229 = vmatprep.subr.mxu0 %v491
        %1230 = vmatpush1.msra.mxu0 %v490
        %1231 = vmatprep.subr.mxu0 %v493
        %1232 = vmatpush1.msra.mxu0 %v492
        %1233 = vmatprep.subr.mxu0 %v495
        %1234 = vmatpush1.msra.mxu0 %v494
        %1235 = vmatprep.subr.mxu0 %v497
        %1236 = vmatpush1.msra.mxu0 %v496
        %1237 = vmatprep.subr.mxu0 %v499
        %1238 = vmatpush1.msra.mxu0 %v498
        %1239 = vmatprep.subr.mxu0 %v501
        %1240 = vmatpush1.msra.mxu0 %v500
        %1241 = vmatprep.subr.mxu0 %v503
        %1242 = vmatpush1.msra.mxu0 %v502
        %1243 = vmatprep.subr.mxu0 %v505
        %1244 = vmatpush1.msra.mxu0 %v504
        %1245 = vmatprep.subr.mxu0 %v507
        %1246 = vmatpush1.msra.mxu0 %v506
        %1247 = vmatprep.subr.mxu0 %v509
        %1248 = vmatpush1.msra.mxu0 %v508
        %1249 = vmatprep.subr.mxu0 %v511
        %1250 = vmatpush1.msra.mxu0 %v510
        %1251 = vmatprep.subr.mxu0 %v513
        %1252 = vmatpush1.msra.mxu0 %v512
        %1253 = vmatprep.subr.mxu0 %v515
        %1254 = vmatpush1.msra.mxu0 %v514
        %1255 = vmatprep.subr.mxu0 0.0
        %1256 = vmatpush1.msra.mxu0 0.0
        %1257 = vmatprep.subr.mxu0 0.0
        %1258 = vmatpush1.msra.mxu0 0.0
        %1259 = vmatprep.subr.mxu0 0.0
        %1260 = vmatpush1.msra.mxu0 0.0
        %1261 = vmatprep.subr.mxu0 0.0
        %1262 = vmatpush1.msra.mxu0 0.0
        %1263 = vmatprep.subr.mxu0 0.0
        %1264 = vmatpush1.msra.mxu0 0.0
        %1265 = vmatprep.subr.mxu0 0.0
        %1266 = vmatpush1.msra.mxu0 0.0
        %1267 = vmatprep.subr.mxu0 0.0
        %1268 = vmatpush1.msra.mxu0 0.0
        %1269 = vmatprep.subr.mxu0 0.0
        %1270 = vmatpush1.msra.mxu0 0.0
        %1271 = vmatprep.subr.mxu0 0.0
        %1272 = vmatpush1.msra.mxu0 0.0
        %1273 = vmatprep.subr.mxu0 0.0
        %1274 = vmatpush1.msra.mxu0 0.0
        %1275 = vmatprep.subr.mxu0 0.0
        %1276 = vmatpush1.msra.mxu0 0.0
        %1277 = vmatprep.subr.mxu0 0.0
        %1278 = vmatpush1.msra.mxu0 0.0
        %1279 = vmatprep.subr.mxu0 0.0
        %1280 = vmatpush1.msra.mxu0 0.0
        %1281 = vmatprep.subr.mxu0 0.0
        %1282 = vmatpush1.msra.mxu0 0.0
        %1283 = vmatprep.subr.mxu0 0.0
        %1284 = vmatpush1.msra.mxu0 0.0
        %1285 = vmatprep.subr.mxu0 0.0
        %1286 = vmatpush1.msra.mxu0 0.0
        %1287 = vmatprep.mubr.f32.mxu0 0.0
        %1288 = vmatmul.mubr.f32.gmra.mrb[0].mxu0 %v992
        %v1289 = vpop.f32.mrb[0].mxu0
        %v1290 = vadd.f32 0.0, %v1289
        %v1291 = vpop.f32.mrb[0].mxu0
        %v1292 = vadd.f32 0.0, %v1291
        %1293 = vdwg.mxu0
        %v1294 = vmax.f32 %v1290, -15.0
        %v1295 = vmax.f32 %v1292, -15.0
        %v1296 = vmin.f32 %v1294, 15.0
        %v1297 = vmin.f32 %v1295, 15.0
        %v1298 = vadd.f32 %v1296, -2.3025851
        %v1299 = vadd.f32 %v1297, -2.3025851
        %v1300 = vmul.f32 %v1298, 1.442695
        %v1301 = vpow.pop %v1300
        %v1302 = vmul.f32 %v1299, 1.442695
        %v1303 = vpow.pop %v1302
        %v1304 = vmul.f32 %v1220, %v1301
        %v1305 = vmul.f32 %v1222, %v1303
        %1306 = vmatprep.subr.mxu0 0.0
        %1307 = vmatpush1.msra.mxu0 %v452
        %1308 = vmatprep.subr.mxu0 0.0
        %1309 = vmatpush1.msra.mxu0 %v453
        %1310 = vmatprep.subr.mxu0 0.0
        %1311 = vmatpush1.msra.mxu0 %v454
        %1312 = vmatprep.subr.mxu0 0.0
        %1313 = vmatpush1.msra.mxu0 %v455
        %1314 = vmatprep.subr.mxu0 0.0
        %1315 = vmatpush1.msra.mxu0 %v456
        %1316 = vmatprep.subr.mxu0 0.0
        %1317 = vmatpush1.msra.mxu0 %v457
        %1318 = vmatprep.subr.mxu0 0.0
        %1319 = vmatpush1.msra.mxu0 %v458
        %1320 = vmatprep.subr.mxu0 0.0
        %1321 = vmatpush1.msra.mxu0 %v459
        %1322 = vmatprep.subr.mxu0 0.0
        %1323 = vmatpush1.msra.mxu0 %v460
        %1324 = vmatprep.subr.mxu0 0.0
        %1325 = vmatpush1.msra.mxu0 %v461
        %1326 = vmatprep.subr.mxu0 0.0
        %1327 = vmatpush1.msra.mxu0 %v462
        %1328 = vmatprep.subr.mxu0 0.0
        %1329 = vmatpush1.msra.mxu0 %v463
        %1330 = vmatprep.subr.mxu0 0.0
        %1331 = vmatpush1.msra.mxu0 %v464
        %1332 = vmatprep.subr.mxu0 0.0
        %1333 = vmatpush1.msra.mxu0 %v465
        %1334 = vmatprep.subr.mxu0 0.0
        %1335 = vmatpush1.msra.mxu0 %v466
        %1336 = vmatprep.subr.mxu0 0.0
        %1337 = vmatpush1.msra.mxu0 %v467
        %1338 = vmatprep.subr.mxu0 0.0
        %1339 = vmatpush1.msra.mxu0 %v468
        %1340 = vmatprep.subr.mxu0 0.0
        %1341 = vmatpush1.msra.mxu0 %v469
        %1342 = vmatprep.subr.mxu0 0.0
        %1343 = vmatpush1.msra.mxu0 %v470
        %1344 = vmatprep.subr.mxu0 0.0
        %1345 = vmatpush1.msra.mxu0 %v471
        %1346 = vmatprep.subr.mxu0 0.0
        %1347 = vmatpush1.msra.mxu0 %v472
        %1348 = vmatprep.subr.mxu0 0.0
        %1349 = vmatpush1.msra.mxu0 %v473
        %1350 = vmatprep.subr.mxu0 0.0
        %1351 = vmatpush1.msra.mxu0 %v474
        %1352 = vmatprep.subr.mxu0 0.0
        %1353 = vmatpush1.msra.mxu0 %v475
        %1354 = vmatprep.subr.mxu0 0.0
        %1355 = vmatpush1.msra.mxu0 %v476
        %1356 = vmatprep.subr.mxu0 0.0
        %1357 = vmatpush1.msra.mxu0 %v477
        %1358 = vmatprep.subr.mxu0 0.0
        %1359 = vmatpush1.msra.mxu0 %v478
        %1360 = vmatprep.subr.mxu0 0.0
        %1361 = vmatpush1.msra.mxu0 %v479
        %1362 = vmatprep.subr.mxu0 0.0
        %1363 = vmatpush1.msra.mxu0 %v480
        %1364 = vmatprep.subr.mxu0 0.0
        %1365 = vmatpush1.msra.mxu0 %v481
        %1366 = vmatprep.subr.mxu0 0.0
        %1367 = vmatpush1.msra.mxu0 %v482
        %1368 = vmatprep.subr.mxu0 0.0
        %1369 = vmatpush1.msra.mxu0 %v483
        %1370 = vmatprep.mubr.f32.mxu0 %v1305
        %1371 = vmatmul.mubr.f32.gmra.mrb[0].mxu0 %v1304
        %v1372 = vpop.f32.mrb[0].mxu0
        %v1373 = vadd.f32 0.0, %v1372
        %v1374 = vpop.f32.mrb[0].mxu0
        %1375 = vdwg.mxu0
        %v1376 = vmax.f32 %v1373, 1e-06
        %v1377 = vrcp.pop %v1376
        %v1378 = vmul.f32 %v1377, 0.01
        %1379 = vxpose.xlu0.b32.start [1/16] %v1301, 128
        %1380 = vxpose.xlu0.b32.cont [2/16] 0.0, 128
        %1381 = vxpose.xlu0.b32.cont [3/16] 0.0, 128
        %1382 = vxpose.xlu0.b32.cont [4/16] 0.0, 128
        %1383 = vxpose.xlu0.b32.cont [5/16] 0.0, 128
        %1384 = vxpose.xlu0.b32.cont [6/16] 0.0, 128
        %1385 = vxpose.xlu0.b32.cont [7/16] 0.0, 128
        %1386 = vxpose.xlu0.b32.cont [8/16] 0.0, 128
        %1387 = vxpose.xlu0.b32.cont [9/16] 0.0, 128
        %1388 = vxpose.xlu0.b32.cont [10/16] 0.0, 128
        %1389 = vxpose.xlu0.b32.cont [11/16] 0.0, 128
        %1390 = vxpose.xlu0.b32.cont [12/16] 0.0, 128
        %1391 = vxpose.xlu0.b32.cont [13/16] 0.0, 128
        %1392 = vxpose.xlu0.b32.cont [14/16] 0.0, 128
        %1393 = vxpose.xlu0.b32.cont [15/16] 0.0, 128
        %1394 = vxpose.xlu0.b32.end [16/16] 0.0, 128
        %v1395 = vpop.trf.xlu0
        %v1396 = vpop.trf.xlu0
        %v1397 = vpop.trf.xlu0
        %v1398 = vpop.trf.xlu0
        %v1399 = vpop.trf.xlu0
        %v1400 = vpop.trf.xlu0
        %v1401 = vpop.trf.xlu0
        %v1402 = vpop.trf.xlu0
        %v1403 = vpop.trf.xlu0
        %v1404 = vpop.trf.xlu0
        %v1405 = vpop.trf.xlu0
        %v1406 = vpop.trf.xlu0
        %v1407 = vpop.trf.xlu0
        %v1408 = vpop.trf.xlu0
        %v1409 = vpop.trf.xlu0
        %v1410 = vpop.trf.xlu0
        %1411 = vxpose.xlu0.b32.start [1/16] %v1303, 128
        %1412 = vxpose.xlu0.b32.cont [2/16] 0.0, 128
        %1413 = vxpose.xlu0.b32.cont [3/16] 0.0, 128
        %1414 = vxpose.xlu0.b32.cont [4/16] 0.0, 128
        %1415 = vxpose.xlu0.b32.cont [5/16] 0.0, 128
        %1416 = vxpose.xlu0.b32.cont [6/16] 0.0, 128
        %1417 = vxpose.xlu0.b32.cont [7/16] 0.0, 128
        %1418 = vxpose.xlu0.b32.cont [8/16] 0.0, 128
        %1419 = vxpose.xlu0.b32.cont [9/16] 0.0, 128
        %1420 = vxpose.xlu0.b32.cont [10/16] 0.0, 128
        %1421 = vxpose.xlu0.b32.cont [11/16] 0.0, 128
        %1422 = vxpose.xlu0.b32.cont [12/16] 0.0, 128
        %1423 = vxpose.xlu0.b32.cont [13/16] 0.0, 128
        %1424 = vxpose.xlu0.b32.cont [14/16] 0.0, 128
        %1425 = vxpose.xlu0.b32.cont [15/16] 0.0, 128
        %1426 = vxpose.xlu0.b32.end [16/16] 0.0, 128
        %v1427 = vpop.trf.xlu0
        %v1428 = vpop.trf.xlu0
        %v1429 = vpop.trf.xlu0
        %v1430 = vpop.trf.xlu0
        %v1431 = vpop.trf.xlu0
        %v1432 = vpop.trf.xlu0
        %v1433 = vpop.trf.xlu0
        %v1434 = vpop.trf.xlu0
        %v1435 = vpop.trf.xlu0
        %v1436 = vpop.trf.xlu0
        %v1437 = vpop.trf.xlu0
        %v1438 = vpop.trf.xlu0
        %v1439 = vpop.trf.xlu0
        %v1440 = vpop.trf.xlu0
        %v1441 = vpop.trf.xlu0
        %v1442 = vpop.trf.xlu0
        %vm1443 = vcmask 64512
        %v1445 = vsel %vm1443, %v1395, 0
        %v1448 = vsel %vm1443, %v1396, 0
        %v1451 = vsel %vm1443, %v1397, 0
        %v1454 = vsel %vm1443, %v1398, 0
        %v1457 = vsel %vm1443, %v1399, 0
        %v1460 = vsel %vm1443, %v1400, 0
        %v1463 = vsel %vm1443, %v1401, 0
        %v1466 = vsel %vm1443, %v1402, 0
        %v1469 = vsel %vm1443, %v1403, 0
        %v1472 = vsel %vm1443, %v1404, 0
        %v1475 = vsel %vm1443, %v1405, 0
        %v1478 = vsel %vm1443, %v1406, 0
        %v1481 = vsel %vm1443, %v1407, 0
        %v1484 = vsel %vm1443, %v1408, 0
        %v1487 = vsel %vm1443, %v1409, 0
        %v1490 = vsel %vm1443, %v1410, 0
        %v1493 = vsel %vm1443, %v1427, 0
        %v1496 = vsel %vm1443, %v1428, 0
        %v1499 = vsel %vm1443, %v1429, 0
        %v1502 = vsel %vm1443, %v1430, 0
        %v1505 = vsel %vm1443, %v1431, 0
        %v1508 = vsel %vm1443, %v1432, 0
        %v1511 = vsel %vm1443, %v1433, 0
        %v1514 = vsel %vm1443, %v1434, 0
        %v1517 = vsel %vm1443, %v1435, 0
        %v1520 = vsel %vm1443, %v1436, 0
        %v1523 = vsel %vm1443, %v1437, 0
        %v1526 = vsel %vm1443, %v1438, 0
        %v1529 = vsel %vm1443, %v1439, 0
        %v1532 = vsel %vm1443, %v1440, 0
        %v1535 = vsel %vm1443, %v1441, 0
        %v1538 = vsel %vm1443, %v1442, 0
        %1540 = vmatprep.subr.mxu0 0.0
        %1541 = vmatpush1.msra.mxu0 %v1141
        %1542 = vmatprep.subr.mxu0 0.0
        %1543 = vmatpush1.msra.mxu0 0.0
        %1544 = vmatprep.subr.mxu0 0.0
        %1545 = vmatpush1.msra.mxu0 0.0
        %1546 = vmatprep.subr.mxu0 0.0
        %1547 = vmatpush1.msra.mxu0 0.0
        %1548 = vmatprep.subr.mxu0 0.0
        %1549 = vmatpush1.msra.mxu0 0.0
        %1550 = vmatprep.subr.mxu0 0.0
        %1551 = vmatpush1.msra.mxu0 0.0
        %1552 = vmatprep.subr.mxu0 0.0
        %1553 = vmatpush1.msra.mxu0 0.0
        %1554 = vmatprep.subr.mxu0 0.0
        %1555 = vmatpush1.msra.mxu0 0.0
        %1556 = vmatprep.subr.mxu0 0.0
        %1557 = vmatpush1.msra.mxu0 0.0
        %1558 = vmatprep.subr.mxu0 0.0
        %1559 = vmatpush1.msra.mxu0 0.0
        %1560 = vmatprep.subr.mxu0 0.0
        %1561 = vmatpush1.msra.mxu0 0.0
        %1562 = vmatprep.subr.mxu0 0.0
        %1563 = vmatpush1.msra.mxu0 0.0
        %1564 = vmatprep.subr.mxu0 0.0
        %1565 = vmatpush1.msra.mxu0 0.0
        %1566 = vmatprep.subr.mxu0 0.0
        %1567 = vmatpush1.msra.mxu0 0.0
        %1568 = vmatprep.subr.mxu0 0.0
        %1569 = vmatpush1.msra.mxu0 0.0
        %1570 = vmatprep.subr.mxu0 0.0
        %1571 = vmatpush1.msra.mxu0 0.0
        %1572 = vmatprep.subr.mxu0 0.0
        %1573 = vmatpush1.msra.mxu0 0.0
        %1574 = vmatprep.subr.mxu0 0.0
        %1575 = vmatpush1.msra.mxu0 0.0
        %1576 = vmatprep.subr.mxu0 0.0
        %1577 = vmatpush1.msra.mxu0 0.0
        %1578 = vmatprep.subr.mxu0 0.0
        %1579 = vmatpush1.msra.mxu0 0.0
        %1580 = vmatprep.subr.mxu0 0.0
        %1581 = vmatpush1.msra.mxu0 0.0
        %1582 = vmatprep.subr.mxu0 0.0
        %1583 = vmatpush1.msra.mxu0 0.0
        %1584 = vmatprep.subr.mxu0 0.0
        %1585 = vmatpush1.msra.mxu0 0.0
        %1586 = vmatprep.subr.mxu0 0.0
        %1587 = vmatpush1.msra.mxu0 0.0
        %1588 = vmatprep.subr.mxu0 0.0
        %1589 = vmatpush1.msra.mxu0 0.0
        %1590 = vmatprep.subr.mxu0 0.0
        %1591 = vmatpush1.msra.mxu0 0.0
        %1592 = vmatprep.subr.mxu0 0.0
        %1593 = vmatpush1.msra.mxu0 0.0
        %1594 = vmatprep.subr.mxu0 0.0
        %1595 = vmatpush1.msra.mxu0 0.0
        %1596 = vmatprep.subr.mxu0 0.0
        %1597 = vmatpush1.msra.mxu0 0.0
        %1598 = vmatprep.subr.mxu0 0.0
        %1599 = vmatpush1.msra.mxu0 0.0
        %1600 = vmatprep.subr.mxu0 0.0
        %1601 = vmatpush1.msra.mxu0 0.0
        %1602 = vmatprep.subr.mxu0 0.0
        %1603 = vmatpush1.msra.mxu0 0.0
        %1604 = vmatprep.mubr.f32.mxu0 0.0
        %1605 = vmatmul.mubr.f32.gmra.mrb[0].mxu0 %v1445
        %v1606 = vpop.f32.mrb[0].mxu0
        %v1607 = vadd.f32 0.0, %v1606
        %v1608 = vpop.f32.mrb[0].mxu0
        %1609 = vmatprep.mubr.f32.mxu0 0.0
        %1610 = vmatmul.mubr.f32.gmra.mrb[0].mxu0 %v1448
        %v1611 = vpop.f32.mrb[0].mxu0
        %v1612 = vadd.f32 0.0, %v1611
        %v1613 = vpop.f32.mrb[0].mxu0
        %1614 = vmatprep.mubr.f32.mxu0 0.0
        %1615 = vmatmul.mubr.f32.gmra.mrb[0].mxu0 %v1451
        %v1616 = vpop.f32.mrb[0].mxu0
        %v1617 = vadd.f32 0.0, %v1616
        %v1618 = vpop.f32.mrb[0].mxu0
        %1619 = vmatprep.mubr.f32.mxu0 0.0
        %1620 = vmatmul.mubr.f32.gmra.mrb[0].mxu0 %v1454
        %v1621 = vpop.f32.mrb[0].mxu0
        %v1622 = vadd.f32 0.0, %v1621
        %v1623 = vpop.f32.mrb[0].mxu0
        %1624 = vmatprep.mubr.f32.mxu0 0.0
        %1625 = vmatmul.mubr.f32.gmra.mrb[0].mxu0 %v1457
        %v1626 = vpop.f32.mrb[0].mxu0
        %v1627 = vadd.f32 0.0, %v1626
        %v1628 = vpop.f32.mrb[0].mxu0
        %1629 = vmatprep.mubr.f32.mxu0 0.0
        %1630 = vmatmul.mubr.f32.gmra.mrb[0].mxu0 %v1460
        %v1631 = vpop.f32.mrb[0].mxu0
        %v1632 = vadd.f32 0.0, %v1631
        %v1633 = vpop.f32.mrb[0].mxu0
        %1634 = vmatprep.mubr.f32.mxu0 0.0
        %1635 = vmatmul.mubr.f32.gmra.mrb[0].mxu0 %v1463
        %v1636 = vpop.f32.mrb[0].mxu0
        %v1637 = vadd.f32 0.0, %v1636
        %v1638 = vpop.f32.mrb[0].mxu0
        %1639 = vmatprep.mubr.f32.mxu0 0.0
        %1640 = vmatmul.mubr.f32.gmra.mrb[0].mxu0 %v1466
        %v1641 = vpop.f32.mrb[0].mxu0
        %v1642 = vadd.f32 0.0, %v1641
        %v1643 = vpop.f32.mrb[0].mxu0
        %1644 = vmatprep.mubr.f32.mxu0 0.0
        %1645 = vmatmul.mubr.f32.gmra.mrb[0].mxu0 %v1469
        %v1646 = vpop.f32.mrb[0].mxu0
        %v1647 = vadd.f32 0.0, %v1646
        %v1648 = vpop.f32.mrb[0].mxu0
        %1649 = vmatprep.mubr.f32.mxu0 0.0
        %1650 = vmatmul.mubr.f32.gmra.mrb[0].mxu0 %v1472
        %v1651 = vpop.f32.mrb[0].mxu0
        %v1652 = vadd.f32 0.0, %v1651
        %v1653 = vpop.f32.mrb[0].mxu0
        %1654 = vmatprep.mubr.f32.mxu0 0.0
        %1655 = vmatmul.mubr.f32.gmra.mrb[0].mxu0 %v1475
        %v1656 = vpop.f32.mrb[0].mxu0
        %v1657 = vadd.f32 0.0, %v1656
        %v1658 = vpop.f32.mrb[0].mxu0
        %1659 = vmatprep.mubr.f32.mxu0 0.0
        %1660 = vmatmul.mubr.f32.gmra.mrb[0].mxu0 %v1478
        %v1661 = vpop.f32.mrb[0].mxu0
        %v1662 = vadd.f32 0.0, %v1661
        %v1663 = vpop.f32.mrb[0].mxu0
        %1664 = vmatprep.mubr.f32.mxu0 0.0
        %1665 = vmatmul.mubr.f32.gmra.mrb[0].mxu0 %v1481
        %v1666 = vpop.f32.mrb[0].mxu0
        %v1667 = vadd.f32 0.0, %v1666
        %v1668 = vpop.f32.mrb[0].mxu0
        %1669 = vmatprep.mubr.f32.mxu0 0.0
        %1670 = vmatmul.mubr.f32.gmra.mrb[0].mxu0 %v1484
        %v1671 = vpop.f32.mrb[0].mxu0
        %v1672 = vadd.f32 0.0, %v1671
        %v1673 = vpop.f32.mrb[0].mxu0
        %1674 = vmatprep.mubr.f32.mxu0 0.0
        %1675 = vmatmul.mubr.f32.gmra.mrb[0].mxu0 %v1487
        %v1676 = vpop.f32.mrb[0].mxu0
        %v1677 = vadd.f32 0.0, %v1676
        %v1678 = vpop.f32.mrb[0].mxu0
        %1679 = vmatprep.mubr.f32.mxu0 0.0
        %1680 = vmatmul.mubr.f32.gmra.mrb[0].mxu0 %v1490
        %v1681 = vpop.f32.mrb[0].mxu0
        %v1682 = vadd.f32 0.0, %v1681
        %v1683 = vpop.f32.mrb[0].mxu0
        %1684 = vmatprep.mubr.f32.mxu0 0.0
        %1685 = vmatmul.mubr.f32.gmra.mrb[0].mxu0 %v1493
        %v1686 = vpop.f32.mrb[0].mxu0
        %v1687 = vadd.f32 0.0, %v1686
        %v1688 = vpop.f32.mrb[0].mxu0
        %1689 = vmatprep.mubr.f32.mxu0 0.0
        %1690 = vmatmul.mubr.f32.gmra.mrb[0].mxu0 %v1496
        %v1691 = vpop.f32.mrb[0].mxu0
        %v1692 = vadd.f32 0.0, %v1691
        %v1693 = vpop.f32.mrb[0].mxu0
        %1694 = vmatprep.mubr.f32.mxu0 0.0
        %1695 = vmatmul.mubr.f32.gmra.mrb[0].mxu0 %v1499
        %v1696 = vpop.f32.mrb[0].mxu0
        %v1697 = vadd.f32 0.0, %v1696
        %v1698 = vpop.f32.mrb[0].mxu0
        %1699 = vmatprep.mubr.f32.mxu0 0.0
        %1700 = vmatmul.mubr.f32.gmra.mrb[0].mxu0 %v1502
        %v1701 = vpop.f32.mrb[0].mxu0
        %v1702 = vadd.f32 0.0, %v1701
        %v1703 = vpop.f32.mrb[0].mxu0
        %1704 = vmatprep.mubr.f32.mxu0 0.0
        %1705 = vmatmul.mubr.f32.gmra.mrb[0].mxu0 %v1505
        %v1706 = vpop.f32.mrb[0].mxu0
        %v1707 = vadd.f32 0.0, %v1706
        %v1708 = vpop.f32.mrb[0].mxu0
        %1709 = vmatprep.mubr.f32.mxu0 0.0
        %1710 = vmatmul.mubr.f32.gmra.mrb[0].mxu0 %v1508
        %v1711 = vpop.f32.mrb[0].mxu0
        %v1712 = vadd.f32 0.0, %v1711
        %v1713 = vpop.f32.mrb[0].mxu0
        %1714 = vmatprep.mubr.f32.mxu0 0.0
        %1715 = vmatmul.mubr.f32.gmra.mrb[0].mxu0 %v1511
        %v1716 = vpop.f32.mrb[0].mxu0
        %v1717 = vadd.f32 0.0, %v1716
        %v1718 = vpop.f32.mrb[0].mxu0
        %1719 = vmatprep.mubr.f32.mxu0 0.0
        %1720 = vmatmul.mubr.f32.gmra.mrb[0].mxu0 %v1514
        %v1721 = vpop.f32.mrb[0].mxu0
        %v1722 = vadd.f32 0.0, %v1721
        %v1723 = vpop.f32.mrb[0].mxu0
        %1724 = vmatprep.mubr.f32.mxu0 0.0
        %1725 = vmatmul.mubr.f32.gmra.mrb[0].mxu0 %v1517
        %v1726 = vpop.f32.mrb[0].mxu0
        %v1727 = vadd.f32 0.0, %v1726
        %v1728 = vpop.f32.mrb[0].mxu0
        %1729 = vmatprep.mubr.f32.mxu0 0.0
        %1730 = vmatmul.mubr.f32.gmra.mrb[0].mxu0 %v1520
        %v1731 = vpop.f32.mrb[0].mxu0
        %v1732 = vadd.f32 0.0, %v1731
        %v1733 = vpop.f32.mrb[0].mxu0
        %1734 = vmatprep.mubr.f32.mxu0 0.0
        %1735 = vmatmul.mubr.f32.gmra.mrb[0].mxu0 %v1523
        %v1736 = vpop.f32.mrb[0].mxu0
        %v1737 = vadd.f32 0.0, %v1736
        %v1738 = vpop.f32.mrb[0].mxu0
        %1739 = vmatprep.mubr.f32.mxu0 0.0
        %1740 = vmatmul.mubr.f32.gmra.mrb[0].mxu0 %v1526
        %v1741 = vpop.f32.mrb[0].mxu0
        %v1742 = vadd.f32 0.0, %v1741
        %v1743 = vpop.f32.mrb[0].mxu0
        %1744 = vmatprep.mubr.f32.mxu0 0.0
        %1745 = vmatmul.mubr.f32.gmra.mrb[0].mxu0 %v1529
        %v1746 = vpop.f32.mrb[0].mxu0
        %v1747 = vadd.f32 0.0, %v1746
        %v1748 = vpop.f32.mrb[0].mxu0
        %1749 = vmatprep.mubr.f32.mxu0 0.0
        %1750 = vmatmul.mubr.f32.gmra.mrb[0].mxu0 %v1532
        %v1751 = vpop.f32.mrb[0].mxu0
        %v1752 = vadd.f32 0.0, %v1751
        %v1753 = vpop.f32.mrb[0].mxu0
        %1754 = vmatprep.mubr.f32.mxu0 0.0
        %1755 = vmatmul.mubr.f32.gmra.mrb[0].mxu0 %v1535
        %v1756 = vpop.f32.mrb[0].mxu0
        %v1757 = vadd.f32 0.0, %v1756
        %v1758 = vpop.f32.mrb[0].mxu0
        %1759 = vmatprep.mubr.f32.mxu0 0.0
        %1760 = vmatmul.mubr.f32.gmra.mrb[0].mxu0 %v1538
        %v1761 = vpop.f32.mrb[0].mxu0
        %v1762 = vadd.f32 0.0, %v1761
        %v1763 = vpop.f32.mrb[0].mxu0
        %1764 = vdwg.mxu0
        %v1765 = vmul.f32 %v1607, %v452
        %v1766 = vmul.f32 %v1612, %v453
        %v1767 = vmul.f32 %v1617, %v454
        %v1768 = vmul.f32 %v1622, %v455
        %v1769 = vmul.f32 %v1627, %v456
        %v1770 = vmul.f32 %v1632, %v457
        %v1771 = vmul.f32 %v1637, %v458
        %v1772 = vmul.f32 %v1642, %v459
        %v1773 = vmul.f32 %v1647, %v460
        %v1774 = vmul.f32 %v1652, %v461
        %v1775 = vmul.f32 %v1657, %v462
        %v1776 = vmul.f32 %v1662, %v463
        %v1777 = vmul.f32 %v1667, %v464
        %v1778 = vmul.f32 %v1672, %v465
        %v1779 = vmul.f32 %v1677, %v466
        %v1780 = vmul.f32 %v1682, %v467
        %v1781 = vmul.f32 %v1687, %v468
        %v1782 = vmul.f32 %v1692, %v469
        %v1783 = vmul.f32 %v1697, %v470
        %v1784 = vmul.f32 %v1702, %v471
        %v1785 = vmul.f32 %v1707, %v472
        %v1786 = vmul.f32 %v1712, %v473
        %v1787 = vmul.f32 %v1717, %v474
        %v1788 = vmul.f32 %v1722, %v475
        %v1789 = vmul.f32 %v1727, %v476
        %v1790 = vmul.f32 %v1732, %v477
        %v1791 = vmul.f32 %v1737, %v478
        %v1792 = vmul.f32 %v1742, %v479
        %v1793 = vmul.f32 %v1747, %v480
        %v1794 = vmul.f32 %v1752, %v481
        %v1795 = vmul.f32 %v1757, %v482
        %v1796 = vmul.f32 %v1762, %v483
        %1797 = vmatprep.subr.mxu0 0.0
        %1798 = vmatpush1.msra.mxu0 %v1765
        %1799 = vmatprep.subr.mxu0 0.0
        %1800 = vmatpush1.msra.mxu0 %v1766
        %1801 = vmatprep.subr.mxu0 0.0
        %1802 = vmatpush1.msra.mxu0 %v1767
        %1803 = vmatprep.subr.mxu0 0.0
        %1804 = vmatpush1.msra.mxu0 %v1768
        %1805 = vmatprep.subr.mxu0 0.0
        %1806 = vmatpush1.msra.mxu0 %v1769
        %1807 = vmatprep.subr.mxu0 0.0
        %1808 = vmatpush1.msra.mxu0 %v1770
        %1809 = vmatprep.subr.mxu0 0.0
        %1810 = vmatpush1.msra.mxu0 %v1771
        %1811 = vmatprep.subr.mxu0 0.0
        %1812 = vmatpush1.msra.mxu0 %v1772
        %1813 = vmatprep.subr.mxu0 0.0
        %1814 = vmatpush1.msra.mxu0 %v1773
        %1815 = vmatprep.subr.mxu0 0.0
        %1816 = vmatpush1.msra.mxu0 %v1774
        %1817 = vmatprep.subr.mxu0 0.0
        %1818 = vmatpush1.msra.mxu0 %v1775
        %1819 = vmatprep.subr.mxu0 0.0
        %1820 = vmatpush1.msra.mxu0 %v1776
        %1821 = vmatprep.subr.mxu0 0.0
        %1822 = vmatpush1.msra.mxu0 %v1777
        %1823 = vmatprep.subr.mxu0 0.0
        %1824 = vmatpush1.msra.mxu0 %v1778
        %1825 = vmatprep.subr.mxu0 0.0
        %1826 = vmatpush1.msra.mxu0 %v1779
        %1827 = vmatprep.subr.mxu0 0.0
        %1828 = vmatpush1.msra.mxu0 %v1780
        %1829 = vmatprep.subr.mxu0 0.0
        %1830 = vmatpush1.msra.mxu0 %v1781
        %1831 = vmatprep.subr.mxu0 0.0
        %1832 = vmatpush1.msra.mxu0 %v1782
        %1833 = vmatprep.subr.mxu0 0.0
        %1834 = vmatpush1.msra.mxu0 %v1783
        %1835 = vmatprep.subr.mxu0 0.0
        %1836 = vmatpush1.msra.mxu0 %v1784
        %1837 = vmatprep.subr.mxu0 0.0
        %1838 = vmatpush1.msra.mxu0 %v1785
        %1839 = vmatprep.subr.mxu0 0.0
        %1840 = vmatpush1.msra.mxu0 %v1786
        %1841 = vmatprep.subr.mxu0 0.0
        %1842 = vmatpush1.msra.mxu0 %v1787
        %1843 = vmatprep.subr.mxu0 0.0
        %1844 = vmatpush1.msra.mxu0 %v1788
        %1845 = vmatprep.subr.mxu0 0.0
        %1846 = vmatpush1.msra.mxu0 %v1789
        %1847 = vmatprep.subr.mxu0 0.0
        %1848 = vmatpush1.msra.mxu0 %v1790
        %1849 = vmatprep.subr.mxu0 0.0
        %1850 = vmatpush1.msra.mxu0 %v1791
        %1851 = vmatprep.subr.mxu0 0.0
        %1852 = vmatpush1.msra.mxu0 %v1792
        %1853 = vmatprep.subr.mxu0 0.0
        %1854 = vmatpush1.msra.mxu0 %v1793
        %1855 = vmatprep.subr.mxu0 0.0
        %1856 = vmatpush1.msra.mxu0 %v1794
        %1857 = vmatprep.subr.mxu0 0.0
        %1858 = vmatpush1.msra.mxu0 %v1795
        %1859 = vmatprep.subr.mxu0 0.0
        %1860 = vmatpush1.msra.mxu0 %v1796
        %1861 = vmatprep.mubr.f32.mxu0 %v1222
        %1862 = vmatmul.mubr.f32.gmra.mrb[0].mxu0 %v1220
        %v1863 = vpop.f32.mrb[0].mxu0
        %v1864 = vadd.f32 0.0, %v1863
        %v1865 = vpop.f32.mrb[0].mxu0
        %1866 = vdwg.mxu0
        %1867 = vst [vmem:[#allocation2] sm:$0xff] %v1864
        %v1868 = vld [vmem:[#allocation2] sm:$0xff]
        %v1869 = vmul.f32 %v1868, %v1378
        %1870 = vmatprep.subr.mxu0 0.0
        %1871 = vmatpush1.msra.mxu0 %v436
        %1872 = vmatprep.subr.mxu0 0.0
        %1873 = vmatpush1.msra.mxu0 %v437
        %1874 = vmatprep.subr.mxu0 0.0
        %1875 = vmatpush1.msra.mxu0 %v438
        %1876 = vmatprep.subr.mxu0 0.0
        %1877 = vmatpush1.msra.mxu0 %v439
        %1878 = vmatprep.subr.mxu0 0.0
        %1879 = vmatpush1.msra.mxu0 %v440
        %1880 = vmatprep.subr.mxu0 0.0
        %1881 = vmatpush1.msra.mxu0 %v441
        %1882 = vmatprep.subr.mxu0 0.0
        %1883 = vmatpush1.msra.mxu0 %v442
        %1884 = vmatprep.subr.mxu0 0.0
        %1885 = vmatpush1.msra.mxu0 %v443
        %1886 = vmatprep.subr.mxu0 0.0
        %1887 = vmatpush1.msra.mxu0 %v444
        %1888 = vmatprep.subr.mxu0 0.0
        %1889 = vmatpush1.msra.mxu0 %v445
        %1890 = vmatprep.subr.mxu0 0.0
        %1891 = vmatpush1.msra.mxu0 %v446
        %1892 = vmatprep.subr.mxu0 0.0
        %1893 = vmatpush1.msra.mxu0 %v447
        %1894 = vmatprep.subr.mxu0 0.0
        %1895 = vmatpush1.msra.mxu0 %v448
        %1896 = vmatprep.subr.mxu0 0.0
        %1897 = vmatpush1.msra.mxu0 %v449
        %1898 = vmatprep.subr.mxu0 0.0
        %1899 = vmatpush1.msra.mxu0 %v450
        %1900 = vmatprep.subr.mxu0 0.0
        %1901 = vmatpush1.msra.mxu0 %v451
        %1902 = vmatprep.subr.mxu0 0.0
        %1903 = vmatpush1.msra.mxu0 0.0
        %1904 = vmatprep.subr.mxu0 0.0
        %1905 = vmatpush1.msra.mxu0 0.0
        %1906 = vmatprep.subr.mxu0 0.0
        %1907 = vmatpush1.msra.mxu0 0.0
        %1908 = vmatprep.subr.mxu0 0.0
        %1909 = vmatpush1.msra.mxu0 0.0
        %1910 = vmatprep.subr.mxu0 0.0
        %1911 = vmatpush1.msra.mxu0 0.0
        %1912 = vmatprep.subr.mxu0 0.0
        %1913 = vmatpush1.msra.mxu0 0.0
        %1914 = vmatprep.subr.mxu0 0.0
        %1915 = vmatpush1.msra.mxu0 0.0
        %1916 = vmatprep.subr.mxu0 0.0
        %1917 = vmatpush1.msra.mxu0 0.0
        %1918 = vmatprep.subr.mxu0 0.0
        %1919 = vmatpush1.msra.mxu0 0.0
        %1920 = vmatprep.subr.mxu0 0.0
        %1921 = vmatpush1.msra.mxu0 0.0
        %1922 = vmatprep.subr.mxu0 0.0
        %1923 = vmatpush1.msra.mxu0 0.0
        %1924 = vmatprep.subr.mxu0 0.0
        %1925 = vmatpush1.msra.mxu0 0.0
        %1926 = vmatprep.subr.mxu0 0.0
        %1927 = vmatpush1.msra.mxu0 0.0
        %1928 = vmatprep.subr.mxu0 0.0
        %1929 = vmatpush1.msra.mxu0 0.0
        %1930 = vmatprep.subr.mxu0 0.0
        %1931 = vmatpush1.msra.mxu0 0.0
        %1932 = vmatprep.subr.mxu0 0.0
        %1933 = vmatpush1.msra.mxu0 0.0
        %1934 = vmatprep.mubr.f32.mxu0 0.0
        %1935 = vmatmul.mubr.f32.gmra.mrb[0].mxu0 %v1869
        %v1936 = vpop.f32.mrb[0].mxu0
        %v1937 = vadd.f32 0.0, %v1936
        %v1938 = vpop.f32.mrb[0].mxu0
        %1939 = vdwg.mxu0
        %v1940 = vmul.f32 %v1937, 0.03125
        %v1941 = vsub.f32 %v1869, %v1940
        %v1942 = vmul.f32 %v1941, %v1941
        %1943 = vmatprep.subr.mxu0 0.0
        %1944 = vmatpush1.msra.mxu0 %v436
        %1945 = vmatprep.subr.mxu0 0.0
        %1946 = vmatpush1.msra.mxu0 %v437
        %1947 = vmatprep.subr.mxu0 0.0
        %1948 = vmatpush1.msra.mxu0 %v438
        %1949 = vmatprep.subr.mxu0 0.0
        %1950 = vmatpush1.msra.mxu0 %v439
        %1951 = vmatprep.subr.mxu0 0.0
        %1952 = vmatpush1.msra.mxu0 %v440
        %1953 = vmatprep.subr.mxu0 0.0
        %1954 = vmatpush1.msra.mxu0 %v441
        %1955 = vmatprep.subr.mxu0 0.0
        %1956 = vmatpush1.msra.mxu0 %v442
        %1957 = vmatprep.subr.mxu0 0.0
        %1958 = vmatpush1.msra.mxu0 %v443
        %1959 = vmatprep.subr.mxu0 0.0
        %1960 = vmatpush1.msra.mxu0 %v444
        %1961 = vmatprep.subr.mxu0 0.0
        %1962 = vmatpush1.msra.mxu0 %v445
        %1963 = vmatprep.subr.mxu0 0.0
        %1964 = vmatpush1.msra.mxu0 %v446
        %1965 = vmatprep.subr.mxu0 0.0
        %1966 = vmatpush1.msra.mxu0 %v447
        %1967 = vmatprep.subr.mxu0 0.0
        %1968 = vmatpush1.msra.mxu0 %v448
        %1969 = vmatprep.subr.mxu0 0.0
        %1970 = vmatpush1.msra.mxu0 %v449
        %1971 = vmatprep.subr.mxu0 0.0
        %1972 = vmatpush1.msra.mxu0 %v450
        %1973 = vmatprep.subr.mxu0 0.0
        %1974 = vmatpush1.msra.mxu0 %v451
        %1975 = vmatprep.subr.mxu0 0.0
        %1976 = vmatpush1.msra.mxu0 0.0
        %1977 = vmatprep.subr.mxu0 0.0
        %1978 = vmatpush1.msra.mxu0 0.0
        %1979 = vmatprep.subr.mxu0 0.0
        %1980 = vmatpush1.msra.mxu0 0.0
        %1981 = vmatprep.subr.mxu0 0.0
        %1982 = vmatpush1.msra.mxu0 0.0
        %1983 = vmatprep.subr.mxu0 0.0
        %1984 = vmatpush1.msra.mxu0 0.0
        %1985 = vmatprep.subr.mxu0 0.0
        %1986 = vmatpush1.msra.mxu0 0.0
        %1987 = vmatprep.subr.mxu0 0.0
        %1988 = vmatpush1.msra.mxu0 0.0
        %1989 = vmatprep.subr.mxu0 0.0
        %1990 = vmatpush1.msra.mxu0 0.0
        %1991 = vmatprep.subr.mxu0 0.0
        %1992 = vmatpush1.msra.mxu0 0.0
        %1993 = vmatprep.subr.mxu0 0.0
        %1994 = vmatpush1.msra.mxu0 0.0
        %1995 = vmatprep.subr.mxu0 0.0
        %1996 = vmatpush1.msra.mxu0 0.0
        %1997 = vmatprep.subr.mxu0 0.0
        %1998 = vmatpush1.msra.mxu0 0.0
        %1999 = vmatprep.subr.mxu0 0.0
        %2000 = vmatpush1.msra.mxu0 0.0
        %2001 = vmatprep.subr.mxu0 0.0
        %2002 = vmatpush1.msra.mxu0 0.0
        %2003 = vmatprep.subr.mxu0 0.0
        %2004 = vmatpush1.msra.mxu0 0.0
        %2005 = vmatprep.subr.mxu0 0.0
        %2006 = vmatpush1.msra.mxu0 0.0
        %2007 = vmatprep.mubr.f32.mxu0 0.0
        %2008 = vmatmul.mubr.f32.gmra.mrb[0].mxu0 %v1942
        %v2009 = vpop.f32.mrb[0].mxu0
        %v2010 = vadd.f32 0.0, %v2009
        %v2011 = vpop.f32.mrb[0].mxu0
        %2012 = vdwg.mxu0
        %v2013 = vmul.f32 %v2010, 0.03125
        %v2014 = vadd.f32 %v2013, 1e-05
        %v2015 = vrsqrt.pop %v2014
        %v2016 = vmul.f32 %v1941, %v2015
        %v2017 = vmul.f32 %v2016, %v672
        %v2018 = vadd.f32 %v2017, %v679
        %2019 = vst [vmem:[%s435] sm:$0xff] %v2018
        %s2020 = sand.u32 %s221, 1
        %s2021 = scalar_lea.sflag [#allocation5], %s2020
        %s2022 = sand.u32 %s221, 1
        %s2023 = smul.addr %s2022, 8
        %s2024 = scalar_lea.vmem [#allocation14], %s2023
        // Predicated region
        $region77: #{tpu_custom_call.1} parent=51 // pred_check
          %p2025 = pneg %p231
        $region78: #{tpu_custom_call.1} parent=51 // pred_check_branch
          %2027 = sbr.rel (%p2025) target = $region80
        $region79: #{tpu_custom_call.1} parent=51 // pred_region
          %s2029 = ssub.s32 128, 128
          %2030 = vsyncadd %s2021, %s2029
          %s2031 = smul.addr %s30, 128
          %s2032 = scalar_lea.hbm %s8, %s2031
          %s2034 = sshll.u32 %s2024, 4
          %s2035 = int_to_ptr.vmem [resolvable:$true] %s2034
          %2037 = dma.vmem_to_hbm [thread:$0]  %s2035, 128, %s2032, %s2021
        $region80: #{tpu_custom_call.1} parent=51 // pred_fallthru
          _
      $region52: #{tpu_custom_call.1} parent=5 // pred_fallthru
        _
      %p2038 = scmp.le.s32.totalorder 2, %s25
      // Predicated region
      $region81: #{tpu_custom_call.1} parent=5 // pred_check
        %p2039 = pneg %p2038
      $region82: #{tpu_custom_call.1} parent=5 // pred_check_branch
        %2041 = sbr.rel (%p2039) target = $region84
      $region83: #{tpu_custom_call.1} parent=5 // pred_region
        %s2042 = ssub.s32 %s25, 2
        // Predicated region
        $region85: #{tpu_custom_call.1} parent=83 // pred_check
          %p2043 = pneg %p237
        $region86: #{tpu_custom_call.1} parent=83 // pred_check_branch
          %2045 = sbr.rel (%p2043) target = $region88
        $region87: #{tpu_custom_call.1} parent=83 // pred_region
          %s2046 = sand.u32 %s222, 1
          %s2047 = scalar_lea.sflag [#allocation5], %s2046
          %s2048 = sand.u32 %s222, 1
          %s2049 = smul.addr %s2048, 8
          %s2050 = scalar_lea.vmem [#allocation14], %s2049
          %2051 = dma.done %s2047, 128
        $region88: #{tpu_custom_call.1} parent=83 // pred_fallthru
          _
      $region84: #{tpu_custom_call.1} parent=5 // pred_fallthru
        _
    $region6: #{tpu_custom_call.1} parent=1 // loop_footer
      %s29 = sadd.s32 1, %s25
    $region7: #{tpu_custom_call.1} parent=1 // loop_footer_branch
      %24 = sbr.rel target = $region3
    $region8: #{tpu_custom_call.1} parent=1 // loop_exit
      _
    %2052 = vsyncpa [#allocation4], 1
    %s2053 = scalar_lea.sflag [#allocation4], 1
    %2054 = vsyncpa %s2053, 1
    %2055 = vsyncpa [#allocation7], 1
    %s2056 = scalar_lea.sflag [#allocation7], 1
    %2057 = vsyncpa %s2056, 1
    %2058 = vsyncpa [#allocation10], 1
    %2059 = vsyncpa [#allocation13], 1
    %2060 = vsyncpa [#allocation5], 1
    %s2061 = scalar_lea.sflag [#allocation5], 1
    %2062 = vsyncpa %s2061, 1

</llo_original>
